<compile_context>
chip_gen: v7x
topology: tpu7x:2x2x1
jax: 0.10.0
libtpu: 0.0.40
codegen_flags: <defaults>
</compile_context>

<pallas_src>
import jax
import jax.numpy as jnp
import numpy as np
from jax.experimental import pallas as pl
from jax.experimental.pallas import tpu as pltpu


def _swish(x):
    return x * jax.nn.sigmoid(x)


# --------------------------------------------------------------------------
# Fused per-edge kernel (row-tiled over edges)
#   rbf0 = swish(rbf @ W_rbf0 + b_rbf0)
#   e    = swish(x_cat @ W_lin[:4H] + rbf0 @ W_lin[4H:] + b_lin)
# --------------------------------------------------------------------------
def init_e_kernel(x_cat_ref, rbf_ref,
                  w_rbf0_ref, b_rbf0_ref,
                  w_lin_xc_ref, w_lin_rbf_ref, b_lin_ref,
                  e_out_ref):
    f32 = jnp.float32
    rbf0 = _swish(
        jnp.dot(rbf_ref[...], w_rbf0_ref[...], preferred_element_type=f32)
        + b_rbf0_ref[...])
    acc = jnp.dot(x_cat_ref[...], w_lin_xc_ref[...], preferred_element_type=f32)
    acc = acc + jnp.dot(rbf0, w_lin_rbf_ref[...], preferred_element_type=f32)
    e_out_ref[...] = _swish(acc + b_lin_ref[...])


def init_e_forward(params, x, chi, rbf, i, j, *, tile_rows=512):
    """Forward of init_e.  Returns (e, 1) like the PyTorch module."""
    H = chi.shape[1]
    E, NR = rbf.shape

    # Row tile: sublane-aligned (multiple of 8), no larger than needed so
    # small edge counts run in a single grid step.
    tile_rows = max(8, min(tile_rows, ((E + 7) // 8) * 8))
    grid_e = pl.cdiv(E, tile_rows)
    e_pad_rows = grid_e * tile_rows
    pad = e_pad_rows - E

    # Pad the cheap side (indices + rbf) so the big gathered feature matrix is
    # produced directly at padded size (no extra [E,4H] HBM pad-copy).
    if pad:
        i = jnp.pad(i, (0, pad))
        j = jnp.pad(j, (0, pad))
        rbf = jnp.pad(rbf, ((0, pad), (0, 0)))

    # TODO(synk): embedding lookup + per-edge i/j gathers are data-dependent
    # indexing; done as a single fused XLA gather (glue) outside the kernel.
    x_emb = params["emb"][x]                                  # [N, H]
    node_feat = jnp.concatenate([x_emb, chi], axis=-1)        # [N, 2H]
    # per edge: [x_emb[i], chi[i], x_emb[j], chi[j]]  ->  [E_pad, 4H]
    x_cat = node_feat[jnp.stack([i, j], axis=1)].reshape(e_pad_rows, 4 * H)

    w_lin = params["w_lin"]                                   # [5H, H]
    w_lin_xc = w_lin[:4 * H]                                  # [4H, H]
    w_lin_rbf = w_lin[4 * H:]                                 # [H, H]

    def rows(feat):
        return pl.BlockSpec((tile_rows, feat), lambda r: (r, 0))

    def whole(a):
        return pl.BlockSpec(a.shape, lambda r: (0, 0))

    flops = 2 * e_pad_rows * H * (NR + 5 * H) + 8 * e_pad_rows * H
    bytes_accessed = 4 * (e_pad_rows * (4 * H + NR + H)
                          + NR * H + 5 * H * H + 2 * H)
    ce = pl.CostEstimate(flops=flops,
                         transcendentals=2 * e_pad_rows * H,
                         bytes_accessed=bytes_accessed)

    e_padded = pl.pallas_call(
        init_e_kernel,
        grid=(grid_e,),
        out_shape=jax.ShapeDtypeStruct((e_pad_rows, H), jnp.float32),
        in_specs=[
            rows(4 * H),                    # gathered node features
            rows(NR),                       # rbf
            whole(params["w_rbf0"]), whole(params["b_rbf0"]),
            whole(w_lin_xc), whole(w_lin_rbf), whole(params["b_lin"]),
        ],
        out_specs=rows(H),
        compiler_params=pltpu.CompilerParams(
            dimension_semantics=("parallel",)),
        cost_estimate=ce,
    )(x_cat, rbf, params["w_rbf0"], params["b_rbf0"],
      w_lin_xc, w_lin_rbf, params["b_lin"])

    return e_padded[:E], 1


# --------------------------------------------------------------------------
# Pure-JAX reference of the same math (for correctness checking)
# --------------------------------------------------------------------------
def init_e_reference(params, x, chi, rbf, i, j):
    x_emb = params["emb"][x]
    rbf0 = _swish(rbf @ params["w_rbf0"] + params["b_rbf0"])
    cat = jnp.concatenate([x_emb[i], chi[i], x_emb[j], chi[j], rbf0], axis=-1)
    e = _swish(cat @ params["w_lin"] + params["b_lin"])
    return e, 1


def init_params(key, *, H, NR):
    k_emb, k_wr, k_br, k_wl, k_bl = jax.random.split(key, 5)

    def w(k, fan_in, fan_out):
        return (jax.random.normal(k, (fan_in, fan_out), jnp.float32)
                / jnp.sqrt(jnp.float32(fan_in)))

    return dict(
        emb=jax.random.normal(k_emb, (95, H), jnp.float32),   # Embedding(95, H)
        w_rbf0=w(k_wr, NR, H),                                 # lin_rbf_0: NR -> H
        b_rbf0=0.1 * jax.random.normal(k_br, (1, H), jnp.float32),
        w_lin=w(k_wl, 5 * H, H),                               # lin: 5H -> H
        b_lin=0.1 * jax.random.normal(k_bl, (1, H), jnp.float32),
    )


if __name__ == "__main__":
    # small init_e-consistent shapes
    H = 128         # hidden_channels (lane-dense output)
    NR = 6          # num_radial
    N = 20          # num nodes
    E = 300         # num edges (not a multiple of the tile -> exercises padding)

    key = jax.random.PRNGKey(0)
    kp, kx, kc, kr, ki, kj = jax.random.split(key, 6)
    params = init_params(kp, H=H, NR=NR)

    x = jax.random.randint(kx, (N,), 0, 95)                    # atomic numbers
    chi = jax.random.normal(kc, (N, H), jnp.float32)           # node features
    rbf = jax.random.normal(kr, (E, NR), jnp.float32)          # emb[0] (dist_emb)
    i = jax.random.randint(ki, (E,), 0, N)
    j = jax.random.randint(kj, (E,), 0, N)

    e, one = jax.jit(init_e_forward)(params, x, chi, rbf, i, j)
    jax.block_until_ready(e)

    r, _ = init_e_reference(params, x, chi, rbf, i, j)
    assert np.allclose(np.asarray(e), np.asarray(r), rtol=5e-4, atol=5e-4)
    assert one == 1
    print("KERNEL_OK")
</pallas_src>

<mosaic_0001>
module attributes {stable_mosaic.version = 11 : i64} {
  func.func @init_e_kernel(%arg0: i32, %arg1: memref<304x512xf32, #tpu.memory_space<vmem>>, %arg2: memref<304x6xf32, #tpu.memory_space<vmem>>, %arg3: memref<6x128xf32, #tpu.memory_space<vmem>>, %arg4: memref<1x128xf32, #tpu.memory_space<vmem>>, %arg5: memref<512x128xf32, #tpu.memory_space<vmem>>, %arg6: memref<128x128xf32, #tpu.memory_space<vmem>>, %arg7: memref<1x128xf32, #tpu.memory_space<vmem>>, %arg8: memref<304x128xf32, #tpu.memory_space<vmem>>) attributes {dimension_semantics = [#tpu.dimension_semantics<parallel>], iteration_bounds = array<i64: 1>, scalar_prefetch = 0 : i64, scratch_operands = 0 : i64, tpu.core_type = #tpu.core_type<tc>, window_params = [{transform_indices = @transform_0, window_bounds = array<i64: 304, 512>}, {transform_indices = @transform_1, window_bounds = array<i64: 304, 6>}, {pipeline_mode = #tpu.pipeline_mode<synchronous>, transform_indices = @transform_2, window_bounds = array<i64: 6, 128>}, {pipeline_mode = #tpu.pipeline_mode<synchronous>, transform_indices = @transform_3, window_bounds = array<i64: 1, 128>}, {pipeline_mode = #tpu.pipeline_mode<synchronous>, transform_indices = @transform_4, window_bounds = array<i64: 512, 128>}, {pipeline_mode = #tpu.pipeline_mode<synchronous>, transform_indices = @transform_5, window_bounds = array<i64: 128, 128>}, {pipeline_mode = #tpu.pipeline_mode<synchronous>, transform_indices = @transform_6, window_bounds = array<i64: 1, 128>}, {transform_indices = @transform_7, window_bounds = array<i64: 304, 128>}]} {
    %c0 = arith.constant 0 : index
    %c0_0 = arith.constant 0 : index
    %0 = vector.load %arg2[%c0, %c0_0] : memref<304x6xf32, #tpu.memory_space<vmem>>, vector<304x6xf32>
    %c0_1 = arith.constant 0 : index
    %c0_2 = arith.constant 0 : index
    %1 = vector.load %arg3[%c0_1, %c0_2] : memref<6x128xf32, #tpu.memory_space<vmem>>, vector<6x128xf32>
    %cst = arith.constant dense<0.000000e+00> : vector<304x128xf32>
    %2 = tpu.matmul %0, %1, %cst {dimension_numbers = #tpu.dot_dimension_numbers<[1], [0], [0], [1], [0, 0, 1, 1], [], []>} : vector<304x6xf32>, vector<6x128xf32>, vector<304x128xf32> -> vector<304x128xf32>
    %c0_3 = arith.constant 0 : index
    %c0_4 = arith.constant 0 : index
    %3 = vector.load %arg4[%c0_3, %c0_4] : memref<1x128xf32, #tpu.memory_space<vmem>>, vector<1x128xf32>
    %4 = vector.broadcast %3 : vector<1x128xf32> to vector<304x128xf32>
    %5 = arith.addf %2, %4 : vector<304x128xf32>
    %6 = arith.negf %5 : vector<304x128xf32>
    %7 = math.exp %6 : vector<304x128xf32>
    %cst_5 = arith.constant 1.000000e+00 : f32
    %8 = vector.broadcast %cst_5 : f32 to vector<304x128xf32>
    %9 = arith.addf %8, %7 : vector<304x128xf32>
    %10 = arith.divf %8, %9 : vector<304x128xf32>
    %11 = arith.mulf %5, %10 : vector<304x128xf32>
    %c0_6 = arith.constant 0 : index
    %c0_7 = arith.constant 0 : index
    %12 = vector.load %arg1[%c0_6, %c0_7] : memref<304x512xf32, #tpu.memory_space<vmem>>, vector<304x512xf32>
    %c0_8 = arith.constant 0 : index
    %c0_9 = arith.constant 0 : index
    %13 = vector.load %arg5[%c0_8, %c0_9] : memref<512x128xf32, #tpu.memory_space<vmem>>, vector<512x128xf32>
    %cst_10 = arith.constant dense<0.000000e+00> : vector<304x128xf32>
    %14 = tpu.matmul %12, %13, %cst_10 {dimension_numbers = #tpu.dot_dimension_numbers<[1], [0], [0], [1], [0, 0, 1, 1], [], []>} : vector<304x512xf32>, vector<512x128xf32>, vector<304x128xf32> -> vector<304x128xf32>
    %c0_11 = arith.constant 0 : index
    %c0_12 = arith.constant 0 : index
    %15 = vector.load %arg6[%c0_11, %c0_12] : memref<128x128xf32, #tpu.memory_space<vmem>>, vector<128x128xf32>
    %cst_13 = arith.constant dense<0.000000e+00> : vector<304x128xf32>
    %16 = tpu.matmul %11, %15, %cst_13 {dimension_numbers = #tpu.dot_dimension_numbers<[1], [0], [0], [1], [0, 0, 1, 1], [], []>} : vector<304x128xf32>, vector<128x128xf32>, vector<304x128xf32> -> vector<304x128xf32>
    %17 = arith.addf %14, %16 : vector<304x128xf32>
    %c0_14 = arith.constant 0 : index
    %c0_15 = arith.constant 0 : index
    %18 = vector.load %arg7[%c0_14, %c0_15] : memref<1x128xf32, #tpu.memory_space<vmem>>, vector<1x128xf32>
    %19 = vector.broadcast %18 : vector<1x128xf32> to vector<304x128xf32>
    %20 = arith.addf %17, %19 : vector<304x128xf32>
    %21 = arith.negf %20 : vector<304x128xf32>
    %22 = math.exp %21 : vector<304x128xf32>
    %cst_16 = arith.constant 1.000000e+00 : f32
    %23 = vector.broadcast %cst_16 : f32 to vector<304x128xf32>
    %24 = arith.addf %23, %22 : vector<304x128xf32>
    %25 = arith.divf %23, %24 : vector<304x128xf32>
    %26 = arith.mulf %20, %25 : vector<304x128xf32>
    %c0_17 = arith.constant 0 : index
    %c0_18 = arith.constant 0 : index
    %27 = vector.load %arg8[%c0_17, %c0_18] : memref<304x128xf32, #tpu.memory_space<vmem>>, vector<304x128xf32>
    tpu.vector_store %arg8[%c0_17, %c0_18], %26 {strides = array<i32>} : memref<304x128xf32, #tpu.memory_space<vmem>>, vector<304x128xf32>,
    return
  }
  func.func @transform_0(%arg0: i32) -> (i32, i32) {
    %c0_i32 = arith.constant 0 : i32
    %c0_i32_0 = arith.constant 0 : i32
    return %arg0, %c0_i32 : i32, i32
  }
  func.func @transform_1(%arg0: i32) -> (i32, i32) {
    %c0_i32 = arith.constant 0 : i32
    %c0_i32_0 = arith.constant 0 : i32
    return %arg0, %c0_i32 : i32, i32
  }
  func.func @transform_2(%arg0: i32) -> (i32, i32) {
    %c0_i32 = arith.constant 0 : i32
    %c0_i32_0 = arith.constant 0 : i32
    %c0_i32_1 = arith.constant 0 : i32
    return %c0_i32, %c0_i32_0 : i32, i32
  }
  func.func @transform_3(%arg0: i32) -> (i32, i32) {
    %c0_i32 = arith.constant 0 : i32
    %c0_i32_0 = arith.constant 0 : i32
    %c0_i32_1 = arith.constant 0 : i32
    return %c0_i32, %c0_i32_0 : i32, i32
  }
  func.func @transform_4(%arg0: i32) -> (i32, i32) {
    %c0_i32 = arith.constant 0 : i32
    %c0_i32_0 = arith.constant 0 : i32
    %c0_i32_1 = arith.constant 0 : i32
    return %c0_i32, %c0_i32_0 : i32, i32
  }
  func.func @transform_5(%arg0: i32) -> (i32, i32) {
    %c0_i32 = arith.constant 0 : i32
    %c0_i32_0 = arith.constant 0 : i32
    %c0_i32_1 = arith.constant 0 : i32
    return %c0_i32, %c0_i32_0 : i32, i32
  }
  func.func @transform_6(%arg0: i32) -> (i32, i32) {
    %c0_i32 = arith.constant 0 : i32
    %c0_i32_0 = arith.constant 0 : i32
    %c0_i32_1 = arith.constant 0 : i32
    return %c0_i32, %c0_i32_0 : i32, i32
  }
  func.func @transform_7(%arg0: i32) -> (i32, i32) {
    %c0_i32 = arith.constant 0 : i32
    %c0_i32_0 = arith.constant 0 : i32
    return %arg0, %c0_i32 : i32, i32
  }
}

</mosaic_0001>

<llo_original>
// kernel: init_e_forward.1
$region0: #{init_e_forward.1}
  #allocation0 [shape = 'u32[]', space=smem, size = 0x4, offset = 0x4, fixed_abs, tag = 'smem constant byte address 0x4 - core index']
  #allocation1 [shape = 'u32[144,128]{1,0:T(1,128)}', space=vmem, size = 0x12000, scoped, tag = 'internal scratch']
  %s0 = inlined_call_operand.vmem [shape: f32[304,512], index: 0, kind: input, shape index: {}]
  %s1 = inlined_call_operand.vmem [shape: f32[304,6], index: 1, kind: input, shape index: {}]
  %s2 = inlined_call_operand.vmem [shape: f32[6,128], index: 2, kind: input, shape index: {}]
  %s3 = inlined_call_operand.vmem [shape: f32[1,128], index: 3, kind: input, shape index: {}]
  %s4 = inlined_call_operand.vmem [shape: f32[512,128], index: 4, kind: input, shape index: {}]
  %s5 = inlined_call_operand.vmem [shape: f32[128,128], index: 5, kind: input, shape index: {}]
  %s6 = inlined_call_operand.vmem [shape: f32[1,128], index: 6, kind: input, shape index: {}]
  %s7 = inlined_call_operand.hbm [shape: f32[304,128], index: 7, kind: output, shape index: {}]
  %s8 = sld [smem:[#allocation0]]
  $region38: #{init_e_forward.1} parent=0
    _
  %s10 = ssub.s32 1, %s8
  %s11 = scalar_select 0, %s10, %s8
  $region1: #{init_e_forward.1} parent=0
    #allocation2 [shape = 'u8[155648]{0}', space=vmem, size = 0x26000, scoped, tag = 'output window, operand 0, single buffered']
    #allocation3 [shape = 's32[1]{0}', space=sflag, size = 0x4, scoped, tag = 'scoped memory for init_e_forward.1']
    %12 = vsyncpa [#allocation3], 0
    // Predicated region
    $region2: #{init_e_forward.1} parent=1 // pred_check
      _
    $region3: #{init_e_forward.1} parent=1 // pred_check_branch
      %14 = sbr.rel (0) target = $region5
    $region4: #{init_e_forward.1} parent=1 // pred_region
      _
    $region5: #{init_e_forward.1} parent=1 // pred_fallthru
      _
    // Predicated region
    $region6: #{init_e_forward.1} parent=1 // pred_check
      _
    $region7: #{init_e_forward.1} parent=1 // pred_check_branch
      %16 = sbr.rel (0) target = $region9
    $region8: #{init_e_forward.1} parent=1 // pred_region
      _
    $region9: #{init_e_forward.1} parent=1 // pred_fallthru
      _
    // Predicated region
    $region10: #{init_e_forward.1} parent=1 // pred_check
      _
    $region11: #{init_e_forward.1} parent=1 // pred_check_branch
      %18 = sbr.rel (0) target = $region13
    $region12: #{init_e_forward.1} parent=1 // pred_region
      _
    $region13: #{init_e_forward.1} parent=1 // pred_fallthru
      _
    // Predicated region
    $region14: #{init_e_forward.1} parent=1 // pred_check
      _
    $region15: #{init_e_forward.1} parent=1 // pred_check_branch
      %20 = sbr.rel (0) target = $region17
    $region16: #{init_e_forward.1} parent=1 // pred_region
      _
    $region17: #{init_e_forward.1} parent=1 // pred_fallthru
      _
    // Predicated region
    $region18: #{init_e_forward.1} parent=1 // pred_check
      _
    $region19: #{init_e_forward.1} parent=1 // pred_check_branch
      %22 = sbr.rel (0) target = $region21
    $region20: #{init_e_forward.1} parent=1 // pred_region
      _
    $region21: #{init_e_forward.1} parent=1 // pred_fallthru
      _
    // Predicated region
    $region22: #{init_e_forward.1} parent=1 // pred_check
      _
    $region23: #{init_e_forward.1} parent=1 // pred_check_branch
      %24 = sbr.rel (0) target = $region25
    $region24: #{init_e_forward.1} parent=1 // pred_region
      _
    $region25: #{init_e_forward.1} parent=1 // pred_fallthru
      _
    // Predicated region
    $region26: #{init_e_forward.1} parent=1 // pred_check
      _
    $region27: #{init_e_forward.1} parent=1 // pred_check_branch
      %26 = sbr.rel (0) target = $region29
    $region28: #{init_e_forward.1} parent=1 // pred_region
      _
    $region29: #{init_e_forward.1} parent=1 // pred_fallthru
      _
    %v27 = vld [vmem:[%s1] sm:$0xff]
    %v28 = vld [vmem:[%s1 + $0x8] sm:$0xff]
    %v29 = vld [vmem:[%s1 + $0x10] sm:$0xff]
    %v30 = vld [vmem:[%s1 + $0x18] sm:$0xff]
    %v31 = vld [vmem:[%s1 + $0x20] sm:$0xff]
    %v32 = vld [vmem:[%s1 + $0x28] sm:$0xff]
    %v33 = vld [vmem:[%s1 + $0x30] sm:$0xff]
    %v34 = vld [vmem:[%s1 + $0x38] sm:$0xff]
    %v35 = vld [vmem:[%s1 + $0x40] sm:$0xff]
    %v36 = vld [vmem:[%s1 + $0x48] sm:$0xff]
    %v37 = vld [vmem:[%s1 + $0x50] sm:$0xff]
    %v38 = vld [vmem:[%s1 + $0x58] sm:$0xff]
    %v39 = vld [vmem:[%s1 + $0x60] sm:$0xff]
    %v40 = vld [vmem:[%s1 + $0x68] sm:$0xff]
    %v41 = vld [vmem:[%s1 + $0x70] sm:$0xff]
    %v42 = vld [vmem:[%s1 + $0x78] sm:$0xff]
    %v43 = vld [vmem:[%s1 + $0x80] sm:$0xff]
    %v44 = vld [vmem:[%s1 + $0x88] sm:$0xff]
    %v45 = vld [vmem:[%s1 + $0x90] sm:$0xff]
    %v46 = vld [vmem:[%s1 + $0x98] sm:$0xff]
    %v47 = vld [vmem:[%s1 + $0xa0] sm:$0xff]
    %v48 = vld [vmem:[%s1 + $0xa8] sm:$0xff]
    %v49 = vld [vmem:[%s1 + $0xb0] sm:$0xff]
    %v50 = vld [vmem:[%s1 + $0xb8] sm:$0xff]
    %v51 = vld [vmem:[%s1 + $0xc0] sm:$0xff]
    %v52 = vld [vmem:[%s1 + $0xc8] sm:$0xff]
    %v53 = vld [vmem:[%s1 + $0xd0] sm:$0xff]
    %v54 = vld [vmem:[%s1 + $0xd8] sm:$0xff]
    %v55 = vld [vmem:[%s1 + $0xe0] sm:$0xff]
    %v56 = vld [vmem:[%s1 + $0xe8] sm:$0xff]
    %v57 = vld [vmem:[%s1 + $0xf0] sm:$0xff]
    %v58 = vld [vmem:[%s1 + $0xf8] sm:$0xff]
    %v59 = vld [vmem:[%s1 + $0x100] sm:$0xff]
    %v60 = vld [vmem:[%s1 + $0x108] sm:$0xff]
    %v61 = vld [vmem:[%s1 + $0x110] sm:$0xff]
    %v62 = vld [vmem:[%s1 + $0x118] sm:$0xff]
    %v63 = vld [vmem:[%s1 + $0x120] sm:$0xff]
    %v64 = vld [vmem:[%s1 + $0x128] sm:$0xff]
    %v65 = vld [vmem:[%s2] sm:$0x3f]
    %v66 = vld [vmem:[%s3] sm:$0x1]
    %v68 = vlaneseq
    %v69 = vshrl.u32 %v68, 7
    %v70 = vsub.s32 0, %v69
    %v71 = vrot.slane %v66, %v70
    %vm73 = vcmask 48128
    %v75 = vsel %vm73, %v27, 0
    %v78 = vsel %vm73, %v28, 0
    %v81 = vsel %vm73, %v29, 0
    %v84 = vsel %vm73, %v30, 0
    %v87 = vsel %vm73, %v31, 0
    %v90 = vsel %vm73, %v32, 0
    %v93 = vsel %vm73, %v33, 0
    %v96 = vsel %vm73, %v34, 0
    %v99 = vsel %vm73, %v35, 0
    %v102 = vsel %vm73, %v36, 0
    %v105 = vsel %vm73, %v37, 0
    %v108 = vsel %vm73, %v38, 0
    %v111 = vsel %vm73, %v39, 0
    %v114 = vsel %vm73, %v40, 0
    %v117 = vsel %vm73, %v41, 0
    %v120 = vsel %vm73, %v42, 0
    %v123 = vsel %vm73, %v43, 0
    %v126 = vsel %vm73, %v44, 0
    %v129 = vsel %vm73, %v45, 0
    %v132 = vsel %vm73, %v46, 0
    %v135 = vsel %vm73, %v47, 0
    %v138 = vsel %vm73, %v48, 0
    %v141 = vsel %vm73, %v49, 0
    %v144 = vsel %vm73, %v50, 0
    %v147 = vsel %vm73, %v51, 0
    %v150 = vsel %vm73, %v52, 0
    %v153 = vsel %vm73, %v53, 0
    %v156 = vsel %vm73, %v54, 0
    %v159 = vsel %vm73, %v55, 0
    %v162 = vsel %vm73, %v56, 0
    %v165 = vsel %vm73, %v57, 0
    %v168 = vsel %vm73, %v58, 0
    %v171 = vsel %vm73, %v59, 0
    %v174 = vsel %vm73, %v60, 0
    %v177 = vsel %vm73, %v61, 0
    %v180 = vsel %vm73, %v62, 0
    %v183 = vsel %vm73, %v63, 0
    %v186 = vsel %vm73, %v64, 0
    %vm188 = vcmask 1045504
    %v190 = vsel %vm188, %v65, 0
    %192 = vmatprep.subr.mxu0 0.0
    %193 = vmatpush1.msra.mxu0 %v190
    %194 = vmatprep.subr.mxu0 0.0
    %195 = vmatpush1.msra.mxu0 0.0
    %196 = vmatprep.subr.mxu0 0.0
    %197 = vmatpush1.msra.mxu0 0.0
    %198 = vmatprep.subr.mxu0 0.0
    %199 = vmatpush1.msra.mxu0 0.0
    %200 = vmatprep.subr.mxu0 0.0
    %201 = vmatpush1.msra.mxu0 0.0
    %202 = vmatprep.subr.mxu0 0.0
    %203 = vmatpush1.msra.mxu0 0.0
    %204 = vmatprep.subr.mxu0 0.0
    %205 = vmatpush1.msra.mxu0 0.0
    %206 = vmatprep.subr.mxu0 0.0
    %207 = vmatpush1.msra.mxu0 0.0
    %208 = vmatprep.subr.mxu0 0.0
    %209 = vmatpush1.msra.mxu0 0.0
    %210 = vmatprep.subr.mxu0 0.0
    %211 = vmatpush1.msra.mxu0 0.0
    %212 = vmatprep.subr.mxu0 0.0
    %213 = vmatpush1.msra.mxu0 0.0
    %214 = vmatprep.subr.mxu0 0.0
    %215 = vmatpush1.msra.mxu0 0.0
    %216 = vmatprep.subr.mxu0 0.0
    %217 = vmatpush1.msra.mxu0 0.0
    %218 = vmatprep.subr.mxu0 0.0
    %219 = vmatpush1.msra.mxu0 0.0
    %220 = vmatprep.subr.mxu0 0.0
    %221 = vmatpush1.msra.mxu0 0.0
    %222 = vmatprep.subr.mxu0 0.0
    %223 = vmatpush1.msra.mxu0 0.0
    %224 = vmatprep.subr.mxu0 0.0
    %225 = vmatpush1.msra.mxu0 0.0
    %226 = vmatprep.subr.mxu0 0.0
    %227 = vmatpush1.msra.mxu0 0.0
    %228 = vmatprep.subr.mxu0 0.0
    %229 = vmatpush1.msra.mxu0 0.0
    %230 = vmatprep.subr.mxu0 0.0
    %231 = vmatpush1.msra.mxu0 0.0
    %232 = vmatprep.subr.mxu0 0.0
    %233 = vmatpush1.msra.mxu0 0.0
    %234 = vmatprep.subr.mxu0 0.0
    %235 = vmatpush1.msra.mxu0 0.0
    %236 = vmatprep.subr.mxu0 0.0
    %237 = vmatpush1.msra.mxu0 0.0
    %238 = vmatprep.subr.mxu0 0.0
    %239 = vmatpush1.msra.mxu0 0.0
    %240 = vmatprep.subr.mxu0 0.0
    %241 = vmatpush1.msra.mxu0 0.0
    %242 = vmatprep.subr.mxu0 0.0
    %243 = vmatpush1.msra.mxu0 0.0
    %244 = vmatprep.subr.mxu0 0.0
    %245 = vmatpush1.msra.mxu0 0.0
    %246 = vmatprep.subr.mxu0 0.0
    %247 = vmatpush1.msra.mxu0 0.0
    %248 = vmatprep.subr.mxu0 0.0
    %249 = vmatpush1.msra.mxu0 0.0
    %250 = vmatprep.subr.mxu0 0.0
    %251 = vmatpush1.msra.mxu0 0.0
    %252 = vmatprep.subr.mxu0 0.0
    %253 = vmatpush1.msra.mxu0 0.0
    %254 = vmatprep.subr.mxu0 0.0
    %255 = vmatpush1.msra.mxu0 0.0
    %256 = vmatprep.mubr.f32.mxu0 0.0
    %257 = vmatmul.mubr.f32.gmra.mrb[0].mxu0 %v75
    %v258 = vpop.f32.mrb[0].mxu0
    %v259 = vadd.f32 %v71, %v258
    %v260 = vpop.f32.mrb[0].mxu0
    %261 = vmatprep.mubr.f32.mxu0 0.0
    %262 = vmatmul.mubr.f32.gmra.mrb[0].mxu0 %v78
    %v263 = vpop.f32.mrb[0].mxu0
    %v264 = vadd.f32 %v71, %v263
    %v265 = vpop.f32.mrb[0].mxu0
    %266 = vmatprep.mubr.f32.mxu0 0.0
    %267 = vmatmul.mubr.f32.gmra.mrb[0].mxu0 %v81
    %v268 = vpop.f32.mrb[0].mxu0
    %v269 = vadd.f32 %v71, %v268
    %v270 = vpop.f32.mrb[0].mxu0
    %271 = vmatprep.mubr.f32.mxu0 0.0
    %272 = vmatmul.mubr.f32.gmra.mrb[0].mxu0 %v84
    %v273 = vpop.f32.mrb[0].mxu0
    %v274 = vadd.f32 %v71, %v273
    %v275 = vpop.f32.mrb[0].mxu0
    %276 = vmatprep.mubr.f32.mxu0 0.0
    %277 = vmatmul.mubr.f32.gmra.mrb[0].mxu0 %v87
    %v278 = vpop.f32.mrb[0].mxu0
    %v279 = vadd.f32 %v71, %v278
    %v280 = vpop.f32.mrb[0].mxu0
    %281 = vmatprep.mubr.f32.mxu0 0.0
    %282 = vmatmul.mubr.f32.gmra.mrb[0].mxu0 %v90
    %v283 = vpop.f32.mrb[0].mxu0
    %v284 = vadd.f32 %v71, %v283
    %v285 = vpop.f32.mrb[0].mxu0
    %286 = vmatprep.mubr.f32.mxu0 0.0
    %287 = vmatmul.mubr.f32.gmra.mrb[0].mxu0 %v93
    %v288 = vpop.f32.mrb[0].mxu0
    %v289 = vadd.f32 %v71, %v288
    %v290 = vpop.f32.mrb[0].mxu0
    %291 = vmatprep.mubr.f32.mxu0 0.0
    %292 = vmatmul.mubr.f32.gmra.mrb[0].mxu0 %v96
    %v293 = vpop.f32.mrb[0].mxu0
    %v294 = vadd.f32 %v71, %v293
    %v295 = vpop.f32.mrb[0].mxu0
    %296 = vmatprep.mubr.f32.mxu0 0.0
    %297 = vmatmul.mubr.f32.gmra.mrb[0].mxu0 %v99
    %v298 = vpop.f32.mrb[0].mxu0
    %v299 = vadd.f32 %v71, %v298
    %v300 = vpop.f32.mrb[0].mxu0
    %301 = vmatprep.mubr.f32.mxu0 0.0
    %302 = vmatmul.mubr.f32.gmra.mrb[0].mxu0 %v102
    %v303 = vpop.f32.mrb[0].mxu0
    %v304 = vadd.f32 %v71, %v303
    %v305 = vpop.f32.mrb[0].mxu0
    %306 = vmatprep.mubr.f32.mxu0 0.0
    %307 = vmatmul.mubr.f32.gmra.mrb[0].mxu0 %v105
    %v308 = vpop.f32.mrb[0].mxu0
    %v309 = vadd.f32 %v71, %v308
    %v310 = vpop.f32.mrb[0].mxu0
    %311 = vmatprep.mubr.f32.mxu0 0.0
    %312 = vmatmul.mubr.f32.gmra.mrb[0].mxu0 %v108
    %v313 = vpop.f32.mrb[0].mxu0
    %v314 = vadd.f32 %v71, %v313
    %v315 = vpop.f32.mrb[0].mxu0
    %316 = vmatprep.mubr.f32.mxu0 0.0
    %317 = vmatmul.mubr.f32.gmra.mrb[0].mxu0 %v111
    %v318 = vpop.f32.mrb[0].mxu0
    %v319 = vadd.f32 %v71, %v318
    %v320 = vpop.f32.mrb[0].mxu0
    %321 = vmatprep.mubr.f32.mxu0 0.0
    %322 = vmatmul.mubr.f32.gmra.mrb[0].mxu0 %v114
    %v323 = vpop.f32.mrb[0].mxu0
    %v324 = vadd.f32 %v71, %v323
    %v325 = vpop.f32.mrb[0].mxu0
    %326 = vmatprep.mubr.f32.mxu0 0.0
    %327 = vmatmul.mubr.f32.gmra.mrb[0].mxu0 %v117
    %v328 = vpop.f32.mrb[0].mxu0
    %v329 = vadd.f32 %v71, %v328
    %v330 = vpop.f32.mrb[0].mxu0
    %331 = vmatprep.mubr.f32.mxu0 0.0
    %332 = vmatmul.mubr.f32.gmra.mrb[0].mxu0 %v120
    %v333 = vpop.f32.mrb[0].mxu0
    %v334 = vadd.f32 %v71, %v333
    %v335 = vpop.f32.mrb[0].mxu0
    %336 = vmatprep.mubr.f32.mxu0 0.0
    %337 = vmatmul.mubr.f32.gmra.mrb[0].mxu0 %v123
    %v338 = vpop.f32.mrb[0].mxu0
    %v339 = vadd.f32 %v71, %v338
    %v340 = vpop.f32.mrb[0].mxu0
    %341 = vmatprep.mubr.f32.mxu0 0.0
    %342 = vmatmul.mubr.f32.gmra.mrb[0].mxu0 %v126
    %v343 = vpop.f32.mrb[0].mxu0
    %v344 = vadd.f32 %v71, %v343
    %v345 = vpop.f32.mrb[0].mxu0
    %346 = vmatprep.mubr.f32.mxu0 0.0
    %347 = vmatmul.mubr.f32.gmra.mrb[0].mxu0 %v129
    %v348 = vpop.f32.mrb[0].mxu0
    %v349 = vadd.f32 %v71, %v348
    %v350 = vpop.f32.mrb[0].mxu0
    %351 = vmatprep.mubr.f32.mxu0 0.0
    %352 = vmatmul.mubr.f32.gmra.mrb[0].mxu0 %v132
    %v353 = vpop.f32.mrb[0].mxu0
    %v354 = vadd.f32 %v71, %v353
    %v355 = vpop.f32.mrb[0].mxu0
    %356 = vmatprep.mubr.f32.mxu0 0.0
    %357 = vmatmul.mubr.f32.gmra.mrb[0].mxu0 %v135
    %v358 = vpop.f32.mrb[0].mxu0
    %v359 = vadd.f32 %v71, %v358
    %v360 = vpop.f32.mrb[0].mxu0
    %361 = vmatprep.mubr.f32.mxu0 0.0
    %362 = vmatmul.mubr.f32.gmra.mrb[0].mxu0 %v138
    %v363 = vpop.f32.mrb[0].mxu0
    %v364 = vadd.f32 %v71, %v363
    %v365 = vpop.f32.mrb[0].mxu0
    %366 = vmatprep.mubr.f32.mxu0 0.0
    %367 = vmatmul.mubr.f32.gmra.mrb[0].mxu0 %v141
    %v368 = vpop.f32.mrb[0].mxu0
    %v369 = vadd.f32 %v71, %v368
    %v370 = vpop.f32.mrb[0].mxu0
    %371 = vmatprep.mubr.f32.mxu0 0.0
    %372 = vmatmul.mubr.f32.gmra.mrb[0].mxu0 %v144
    %v373 = vpop.f32.mrb[0].mxu0
    %v374 = vadd.f32 %v71, %v373
    %v375 = vpop.f32.mrb[0].mxu0
    %376 = vmatprep.mubr.f32.mxu0 0.0
    %377 = vmatmul.mubr.f32.gmra.mrb[0].mxu0 %v147
    %v378 = vpop.f32.mrb[0].mxu0
    %v379 = vadd.f32 %v71, %v378
    %v380 = vpop.f32.mrb[0].mxu0
    %381 = vmatprep.mubr.f32.mxu0 0.0
    %382 = vmatmul.mubr.f32.gmra.mrb[0].mxu0 %v150
    %v383 = vpop.f32.mrb[0].mxu0
    %v384 = vadd.f32 %v71, %v383
    %v385 = vpop.f32.mrb[0].mxu0
    %386 = vmatprep.mubr.f32.mxu0 0.0
    %387 = vmatmul.mubr.f32.gmra.mrb[0].mxu0 %v153
    %v388 = vpop.f32.mrb[0].mxu0
    %v389 = vadd.f32 %v71, %v388
    %v390 = vpop.f32.mrb[0].mxu0
    %391 = vmatprep.mubr.f32.mxu0 0.0
    %392 = vmatmul.mubr.f32.gmra.mrb[0].mxu0 %v156
    %v393 = vpop.f32.mrb[0].mxu0
    %v394 = vadd.f32 %v71, %v393
    %v395 = vpop.f32.mrb[0].mxu0
    %396 = vmatprep.mubr.f32.mxu0 0.0
    %397 = vmatmul.mubr.f32.gmra.mrb[0].mxu0 %v159
    %v398 = vpop.f32.mrb[0].mxu0
    %v399 = vadd.f32 %v71, %v398
    %v400 = vpop.f32.mrb[0].mxu0
    %401 = vmatprep.mubr.f32.mxu0 0.0
    %402 = vmatmul.mubr.f32.gmra.mrb[0].mxu0 %v162
    %v403 = vpop.f32.mrb[0].mxu0
    %v404 = vadd.f32 %v71, %v403
    %v405 = vpop.f32.mrb[0].mxu0
    %406 = vmatprep.mubr.f32.mxu0 0.0
    %407 = vmatmul.mubr.f32.gmra.mrb[0].mxu0 %v165
    %v408 = vpop.f32.mrb[0].mxu0
    %v409 = vadd.f32 %v71, %v408
    %v410 = vpop.f32.mrb[0].mxu0
    %411 = vmatprep.mubr.f32.mxu0 0.0
    %412 = vmatmul.mubr.f32.gmra.mrb[0].mxu0 %v168
    %v413 = vpop.f32.mrb[0].mxu0
    %v414 = vadd.f32 %v71, %v413
    %v415 = vpop.f32.mrb[0].mxu0
    %416 = vmatprep.mubr.f32.mxu0 0.0
    %417 = vmatmul.mubr.f32.gmra.mrb[0].mxu0 %v171
    %v418 = vpop.f32.mrb[0].mxu0
    %v419 = vadd.f32 %v71, %v418
    %v420 = vpop.f32.mrb[0].mxu0
    %421 = vmatprep.mubr.f32.mxu0 0.0
    %422 = vmatmul.mubr.f32.gmra.mrb[0].mxu0 %v174
    %v423 = vpop.f32.mrb[0].mxu0
    %v424 = vadd.f32 %v71, %v423
    %v425 = vpop.f32.mrb[0].mxu0
    %426 = vmatprep.mubr.f32.mxu0 0.0
    %427 = vmatmul.mubr.f32.gmra.mrb[0].mxu0 %v177
    %v428 = vpop.f32.mrb[0].mxu0
    %v429 = vadd.f32 %v71, %v428
    %v430 = vpop.f32.mrb[0].mxu0
    %431 = vmatprep.mubr.f32.mxu0 0.0
    %432 = vmatmul.mubr.f32.gmra.mrb[0].mxu0 %v180
    %v433 = vpop.f32.mrb[0].mxu0
    %v434 = vadd.f32 %v71, %v433
    %v435 = vpop.f32.mrb[0].mxu0
    %436 = vmatprep.mubr.f32.mxu0 0.0
    %437 = vmatmul.mubr.f32.gmra.mrb[0].mxu0 %v183
    %v438 = vpop.f32.mrb[0].mxu0
    %v439 = vadd.f32 %v71, %v438
    %v440 = vpop.f32.mrb[0].mxu0
    %441 = vmatprep.mubr.f32.mxu0 0.0
    %442 = vmatmul.mubr.f32.gmra.mrb[0].mxu0 %v186
    %v443 = vpop.f32.mrb[0].mxu0
    %v444 = vadd.f32 %v71, %v443
    %v445 = vpop.f32.mrb[0].mxu0
    %446 = vdwg.mxu0
    %v447 = vxor.u32 %v259, 2147483648
    %v448 = vxor.u32 %v264, 2147483648
    %v449 = vxor.u32 %v269, 2147483648
    %v450 = vxor.u32 %v274, 2147483648
    %v451 = vxor.u32 %v279, 2147483648
    %v452 = vxor.u32 %v284, 2147483648
    %v453 = vxor.u32 %v289, 2147483648
    %v454 = vxor.u32 %v294, 2147483648
    %v455 = vxor.u32 %v299, 2147483648
    %v456 = vxor.u32 %v304, 2147483648
    %v457 = vxor.u32 %v309, 2147483648
    %v458 = vxor.u32 %v314, 2147483648
    %v459 = vxor.u32 %v319, 2147483648
    %v460 = vxor.u32 %v324, 2147483648
    %v461 = vxor.u32 %v329, 2147483648
    %v462 = vxor.u32 %v334, 2147483648
    %v463 = vxor.u32 %v339, 2147483648
    %v464 = vxor.u32 %v344, 2147483648
    %v465 = vxor.u32 %v349, 2147483648
    %v466 = vxor.u32 %v354, 2147483648
    %v467 = vxor.u32 %v359, 2147483648
    %v468 = vxor.u32 %v364, 2147483648
    %v469 = vxor.u32 %v369, 2147483648
    %v470 = vxor.u32 %v374, 2147483648
    %v471 = vxor.u32 %v379, 2147483648
    %v472 = vxor.u32 %v384, 2147483648
    %v473 = vxor.u32 %v389, 2147483648
    %v474 = vxor.u32 %v394, 2147483648
    %v475 = vxor.u32 %v399, 2147483648
    %v476 = vxor.u32 %v404, 2147483648
    %v477 = vxor.u32 %v409, 2147483648
    %v478 = vxor.u32 %v414, 2147483648
    %v479 = vxor.u32 %v419, 2147483648
    %v480 = vxor.u32 %v424, 2147483648
    %v481 = vxor.u32 %v429, 2147483648
    %v482 = vxor.u32 %v434, 2147483648
    %v483 = vxor.u32 %v439, 2147483648
    %v484 = vxor.u32 %v444, 2147483648
    %v485 = vmul.f32 %v447, 1.442695
    %v486 = vpow.pop %v485
    %v487 = vmul.f32 %v448, 1.442695
    %v488 = vpow.pop %v487
    %v489 = vmul.f32 %v449, 1.442695
    %v490 = vpow.pop %v489
    %v491 = vmul.f32 %v450, 1.442695
    %v492 = vpow.pop %v491
    %v493 = vmul.f32 %v451, 1.442695
    %v494 = vpow.pop %v493
    %v495 = vmul.f32 %v452, 1.442695
    %v496 = vpow.pop %v495
    %v497 = vmul.f32 %v453, 1.442695
    %v498 = vpow.pop %v497
    %v499 = vmul.f32 %v454, 1.442695
    %v500 = vpow.pop %v499
    %v501 = vmul.f32 %v455, 1.442695
    %v502 = vpow.pop %v501
    %v503 = vmul.f32 %v456, 1.442695
    %v504 = vpow.pop %v503
    %v505 = vmul.f32 %v457, 1.442695
    %v506 = vpow.pop %v505
    %v507 = vmul.f32 %v458, 1.442695
    %v508 = vpow.pop %v507
    %v509 = vmul.f32 %v459, 1.442695
    %v510 = vpow.pop %v509
    %v511 = vmul.f32 %v460, 1.442695
    %v512 = vpow.pop %v511
    %v513 = vmul.f32 %v461, 1.442695
    %v514 = vpow.pop %v513
    %v515 = vmul.f32 %v462, 1.442695
    %v516 = vpow.pop %v515
    %v517 = vmul.f32 %v463, 1.442695
    %v518 = vpow.pop %v517
    %v519 = vmul.f32 %v464, 1.442695
    %v520 = vpow.pop %v519
    %v521 = vmul.f32 %v465, 1.442695
    %v522 = vpow.pop %v521
    %v523 = vmul.f32 %v466, 1.442695
    %v524 = vpow.pop %v523
    %v525 = vmul.f32 %v467, 1.442695
    %v526 = vpow.pop %v525
    %v527 = vmul.f32 %v468, 1.442695
    %v528 = vpow.pop %v527
    %v529 = vmul.f32 %v469, 1.442695
    %v530 = vpow.pop %v529
    %v531 = vmul.f32 %v470, 1.442695
    %v532 = vpow.pop %v531
    %v533 = vmul.f32 %v471, 1.442695
    %v534 = vpow.pop %v533
    %v535 = vmul.f32 %v472, 1.442695
    %v536 = vpow.pop %v535
    %v537 = vmul.f32 %v473, 1.442695
    %v538 = vpow.pop %v537
    %v539 = vmul.f32 %v474, 1.442695
    %v540 = vpow.pop %v539
    %v541 = vmul.f32 %v475, 1.442695
    %v542 = vpow.pop %v541
    %v543 = vmul.f32 %v476, 1.442695
    %v544 = vpow.pop %v543
    %v545 = vmul.f32 %v477, 1.442695
    %v546 = vpow.pop %v545
    %v547 = vmul.f32 %v478, 1.442695
    %v548 = vpow.pop %v547
    %v549 = vmul.f32 %v479, 1.442695
    %v550 = vpow.pop %v549
    %v551 = vmul.f32 %v480, 1.442695
    %v552 = vpow.pop %v551
    %v553 = vmul.f32 %v481, 1.442695
    %v554 = vpow.pop %v553
    %v555 = vmul.f32 %v482, 1.442695
    %v556 = vpow.pop %v555
    %v557 = vmul.f32 %v483, 1.442695
    %v558 = vpow.pop %v557
    %v559 = vmul.f32 %v484, 1.442695
    %v560 = vpow.pop %v559
    %v561 = vadd.f32 %v486, 1.0
    %v562 = vadd.f32 %v488, 1.0
    %v563 = vadd.f32 %v490, 1.0
    %v564 = vadd.f32 %v492, 1.0
    %v565 = vadd.f32 %v494, 1.0
    %v566 = vadd.f32 %v496, 1.0
    %v567 = vadd.f32 %v498, 1.0
    %v568 = vadd.f32 %v500, 1.0
    %v569 = vadd.f32 %v502, 1.0
    %v570 = vadd.f32 %v504, 1.0
    %v571 = vadd.f32 %v506, 1.0
    %v572 = vadd.f32 %v508, 1.0
    %v573 = vadd.f32 %v510, 1.0
    %v574 = vadd.f32 %v512, 1.0
    %v575 = vadd.f32 %v514, 1.0
    %v576 = vadd.f32 %v516, 1.0
    %v577 = vadd.f32 %v518, 1.0
    %v578 = vadd.f32 %v520, 1.0
    %v579 = vadd.f32 %v522, 1.0
    %v580 = vadd.f32 %v524, 1.0
    %v581 = vadd.f32 %v526, 1.0
    %v582 = vadd.f32 %v528, 1.0
    %v583 = vadd.f32 %v530, 1.0
    %v584 = vadd.f32 %v532, 1.0
    %v585 = vadd.f32 %v534, 1.0
    %v586 = vadd.f32 %v536, 1.0
    %v587 = vadd.f32 %v538, 1.0
    %v588 = vadd.f32 %v540, 1.0
    %v589 = vadd.f32 %v542, 1.0
    %v590 = vadd.f32 %v544, 1.0
    %v591 = vadd.f32 %v546, 1.0
    %v592 = vadd.f32 %v548, 1.0
    %v593 = vadd.f32 %v550, 1.0
    %v594 = vadd.f32 %v552, 1.0
    %v595 = vadd.f32 %v554, 1.0
    %v596 = vadd.f32 %v556, 1.0
    %v597 = vadd.f32 %v558, 1.0
    %v598 = vadd.f32 %v560, 1.0
    %v599 = vrcp.pop %v561
    %v600 = vmul.f32 1.0, %v599
    %v601 = vrcp.pop %v562
    %v602 = vmul.f32 1.0, %v601
    %v603 = vrcp.pop %v563
    %v604 = vmul.f32 1.0, %v603
    %v605 = vrcp.pop %v564
    %v606 = vmul.f32 1.0, %v605
    %v607 = vrcp.pop %v565
    %v608 = vmul.f32 1.0, %v607
    %v609 = vrcp.pop %v566
    %v610 = vmul.f32 1.0, %v609
    %v611 = vrcp.pop %v567
    %v612 = vmul.f32 1.0, %v611
    %v613 = vrcp.pop %v568
    %v614 = vmul.f32 1.0, %v613
    %v615 = vrcp.pop %v569
    %v616 = vmul.f32 1.0, %v615
    %v617 = vrcp.pop %v570
    %v618 = vmul.f32 1.0, %v617
    %v619 = vrcp.pop %v571
    %v620 = vmul.f32 1.0, %v619
    %v621 = vrcp.pop %v572
    %v622 = vmul.f32 1.0, %v621
    %v623 = vrcp.pop %v573
    %v624 = vmul.f32 1.0, %v623
    %v625 = vrcp.pop %v574
    %v626 = vmul.f32 1.0, %v625
    %v627 = vrcp.pop %v575
    %v628 = vmul.f32 1.0, %v627
    %v629 = vrcp.pop %v576
    %v630 = vmul.f32 1.0, %v629
    %v631 = vrcp.pop %v577
    %v632 = vmul.f32 1.0, %v631
    %v633 = vrcp.pop %v578
    %v634 = vmul.f32 1.0, %v633
    %v635 = vrcp.pop %v579
    %v636 = vmul.f32 1.0, %v635
    %v637 = vrcp.pop %v580
    %v638 = vmul.f32 1.0, %v637
    %v639 = vrcp.pop %v581
    %v640 = vmul.f32 1.0, %v639
    %v641 = vrcp.pop %v582
    %v642 = vmul.f32 1.0, %v641
    %v643 = vrcp.pop %v583
    %v644 = vmul.f32 1.0, %v643
    %v645 = vrcp.pop %v584
    %v646 = vmul.f32 1.0, %v645
    %v647 = vrcp.pop %v585
    %v648 = vmul.f32 1.0, %v647
    %v649 = vrcp.pop %v586
    %v650 = vmul.f32 1.0, %v649
    %v651 = vrcp.pop %v587
    %v652 = vmul.f32 1.0, %v651
    %v653 = vrcp.pop %v588
    %v654 = vmul.f32 1.0, %v653
    %v655 = vrcp.pop %v589
    %v656 = vmul.f32 1.0, %v655
    %v657 = vrcp.pop %v590
    %v658 = vmul.f32 1.0, %v657
    %v659 = vrcp.pop %v591
    %v660 = vmul.f32 1.0, %v659
    %v661 = vrcp.pop %v592
    %v662 = vmul.f32 1.0, %v661
    %v663 = vrcp.pop %v593
    %v664 = vmul.f32 1.0, %v663
    %v665 = vrcp.pop %v594
    %v666 = vmul.f32 1.0, %v665
    %v667 = vrcp.pop %v595
    %v668 = vmul.f32 1.0, %v667
    %v669 = vrcp.pop %v596
    %v670 = vmul.f32 1.0, %v669
    %v671 = vrcp.pop %v597
    %v672 = vmul.f32 1.0, %v671
    %v673 = vrcp.pop %v598
    %v674 = vmul.f32 1.0, %v673
    %v675 = vmul.f32 %v259, %v600
    %v676 = vmul.f32 %v264, %v602
    %v677 = vmul.f32 %v269, %v604
    %v678 = vmul.f32 %v274, %v606
    %v679 = vmul.f32 %v279, %v608
    %v680 = vmul.f32 %v284, %v610
    %v681 = vmul.f32 %v289, %v612
    %v682 = vmul.f32 %v294, %v614
    %v683 = vmul.f32 %v299, %v616
    %v684 = vmul.f32 %v304, %v618
    %v685 = vmul.f32 %v309, %v620
    %v686 = vmul.f32 %v314, %v622
    %v687 = vmul.f32 %v319, %v624
    %v688 = vmul.f32 %v324, %v626
    %v689 = vmul.f32 %v329, %v628
    %v690 = vmul.f32 %v334, %v630
    %v691 = vmul.f32 %v339, %v632
    %v692 = vmul.f32 %v344, %v634
    %v693 = vmul.f32 %v349, %v636
    %v694 = vmul.f32 %v354, %v638
    %v695 = vmul.f32 %v359, %v640
    %v696 = vmul.f32 %v364, %v642
    %v697 = vmul.f32 %v369, %v644
    %v698 = vmul.f32 %v374, %v646
    %v699 = vmul.f32 %v379, %v648
    %v700 = vmul.f32 %v384, %v650
    %v701 = vmul.f32 %v389, %v652
    %v702 = vmul.f32 %v394, %v654
    %v703 = vmul.f32 %v399, %v656
    %v704 = vmul.f32 %v404, %v658
    %v705 = vmul.f32 %v409, %v660
    %v706 = vmul.f32 %v414, %v662
    %v707 = vmul.f32 %v419, %v664
    %v708 = vmul.f32 %v424, %v666
    %v709 = vmul.f32 %v429, %v668
    %v710 = vmul.f32 %v434, %v670
    %v711 = vmul.f32 %v439, %v672
    %v712 = vmul.f32 %v444, %v674
    %v713 = vld [vmem:[%s0] sm:$0xff]
    %v714 = vld [vmem:[%s0 + $0x8] sm:$0xff]
    %v715 = vld [vmem:[%s0 + $0x10] sm:$0xff]
    %v716 = vld [vmem:[%s0 + $0x18] sm:$0xff]
    %v717 = vld [vmem:[%s0 + $0x20] sm:$0xff]
    %v718 = vld [vmem:[%s0 + $0x28] sm:$0xff]
    %v719 = vld [vmem:[%s0 + $0x30] sm:$0xff]
    %v720 = vld [vmem:[%s0 + $0x38] sm:$0xff]
    %v721 = vld [vmem:[%s0 + $0x40] sm:$0xff]
    %v722 = vld [vmem:[%s0 + $0x48] sm:$0xff]
    %v723 = vld [vmem:[%s0 + $0x50] sm:$0xff]
    %v724 = vld [vmem:[%s0 + $0x58] sm:$0xff]
    %v725 = vld [vmem:[%s0 + $0x60] sm:$0xff]
    %v726 = vld [vmem:[%s0 + $0x68] sm:$0xff]
    %v727 = vld [vmem:[%s0 + $0x70] sm:$0xff]
    %v728 = vld [vmem:[%s0 + $0x78] sm:$0xff]
    %v729 = vld [vmem:[%s0 + $0x80] sm:$0xff]
    %v730 = vld [vmem:[%s0 + $0x88] sm:$0xff]
    %v731 = vld [vmem:[%s0 + $0x90] sm:$0xff]
    %v732 = vld [vmem:[%s0 + $0x98] sm:$0xff]
    %v733 = vld [vmem:[%s0 + $0xa0] sm:$0xff]
    %v734 = vld [vmem:[%s0 + $0xa8] sm:$0xff]
    %v735 = vld [vmem:[%s0 + $0xb0] sm:$0xff]
    %v736 = vld [vmem:[%s0 + $0xb8] sm:$0xff]
    %v737 = vld [vmem:[%s0 + $0xc0] sm:$0xff]
    %v738 = vld [vmem:[%s0 + $0xc8] sm:$0xff]
    %v739 = vld [vmem:[%s0 + $0xd0] sm:$0xff]
    %v740 = vld [vmem:[%s0 + $0xd8] sm:$0xff]
    %v741 = vld [vmem:[%s0 + $0xe0] sm:$0xff]
    %v742 = vld [vmem:[%s0 + $0xe8] sm:$0xff]
    %v743 = vld [vmem:[%s0 + $0xf0] sm:$0xff]
    %v744 = vld [vmem:[%s0 + $0xf8] sm:$0xff]
    %v745 = vld [vmem:[%s0 + $0x100] sm:$0xff]
    %v746 = vld [vmem:[%s0 + $0x108] sm:$0xff]
    %v747 = vld [vmem:[%s0 + $0x110] sm:$0xff]
    %v748 = vld [vmem:[%s0 + $0x118] sm:$0xff]
    %v749 = vld [vmem:[%s0 + $0x120] sm:$0xff]
    %v750 = vld [vmem:[%s0 + $0x128] sm:$0xff]
    %v751 = vld [vmem:[%s0 + $0x130] sm:$0xff]
    %v752 = vld [vmem:[%s0 + $0x138] sm:$0xff]
    %v753 = vld [vmem:[%s0 + $0x140] sm:$0xff]
    %v754 = vld [vmem:[%s0 + $0x148] sm:$0xff]
    %v755 = vld [vmem:[%s0 + $0x150] sm:$0xff]
    %v756 = vld [vmem:[%s0 + $0x158] sm:$0xff]
    %v757 = vld [vmem:[%s0 + $0x160] sm:$0xff]
    %v758 = vld [vmem:[%s0 + $0x168] sm:$0xff]
    %v759 = vld [vmem:[%s0 + $0x170] sm:$0xff]
    %v760 = vld [vmem:[%s0 + $0x178] sm:$0xff]
    %v761 = vld [vmem:[%s0 + $0x180] sm:$0xff]
    %v762 = vld [vmem:[%s0 + $0x188] sm:$0xff]
    %v763 = vld [vmem:[%s0 + $0x190] sm:$0xff]
    %v764 = vld [vmem:[%s0 + $0x198] sm:$0xff]
    %v765 = vld [vmem:[%s0 + $0x1a0] sm:$0xff]
    %v766 = vld [vmem:[%s0 + $0x1a8] sm:$0xff]
    %v767 = vld [vmem:[%s0 + $0x1b0] sm:$0xff]
    %v768 = vld [vmem:[%s0 + $0x1b8] sm:$0xff]
    %v769 = vld [vmem:[%s0 + $0x1c0] sm:$0xff]
    %v770 = vld [vmem:[%s0 + $0x1c8] sm:$0xff]
    %v771 = vld [vmem:[%s0 + $0x1d0] sm:$0xff]
    %v772 = vld [vmem:[%s0 + $0x1d8] sm:$0xff]
    %v773 = vld [vmem:[%s0 + $0x1e0] sm:$0xff]
    %v774 = vld [vmem:[%s0 + $0x1e8] sm:$0xff]
    %v775 = vld [vmem:[%s0 + $0x1f0] sm:$0xff]
    %v776 = vld [vmem:[%s0 + $0x1f8] sm:$0xff]
    %v777 = vld [vmem:[%s0 + $0x200] sm:$0xff]
    %v778 = vld [vmem:[%s0 + $0x208] sm:$0xff]
    %v779 = vld [vmem:[%s0 + $0x210] sm:$0xff]
    %v780 = vld [vmem:[%s0 + $0x218] sm:$0xff]
    %v781 = vld [vmem:[%s0 + $0x220] sm:$0xff]
    %v782 = vld [vmem:[%s0 + $0x228] sm:$0xff]
    %v783 = vld [vmem:[%s0 + $0x230] sm:$0xff]
    %v784 = vld [vmem:[%s0 + $0x238] sm:$0xff]
    %v785 = vld [vmem:[%s0 + $0x240] sm:$0xff]
    %v786 = vld [vmem:[%s0 + $0x248] sm:$0xff]
    %v787 = vld [vmem:[%s0 + $0x250] sm:$0xff]
    %v788 = vld [vmem:[%s0 + $0x258] sm:$0xff]
    %v789 = vld [vmem:[%s0 + $0x260] sm:$0xff]
    %v790 = vld [vmem:[%s0 + $0x268] sm:$0xff]
    %v791 = vld [vmem:[%s0 + $0x270] sm:$0xff]
    %v792 = vld [vmem:[%s0 + $0x278] sm:$0xff]
    %v793 = vld [vmem:[%s0 + $0x280] sm:$0xff]
    %v794 = vld [vmem:[%s0 + $0x288] sm:$0xff]
    %v795 = vld [vmem:[%s0 + $0x290] sm:$0xff]
    %v796 = vld [vmem:[%s0 + $0x298] sm:$0xff]
    %v797 = vld [vmem:[%s0 + $0x2a0] sm:$0xff]
    %v798 = vld [vmem:[%s0 + $0x2a8] sm:$0xff]
    %v799 = vld [vmem:[%s0 + $0x2b0] sm:$0xff]
    %v800 = vld [vmem:[%s0 + $0x2b8] sm:$0xff]
    %v801 = vld [vmem:[%s0 + $0x2c0] sm:$0xff]
    %v802 = vld [vmem:[%s0 + $0x2c8] sm:$0xff]
    %v803 = vld [vmem:[%s0 + $0x2d0] sm:$0xff]
    %v804 = vld [vmem:[%s0 + $0x2d8] sm:$0xff]
    %v805 = vld [vmem:[%s0 + $0x2e0] sm:$0xff]
    %v806 = vld [vmem:[%s0 + $0x2e8] sm:$0xff]
    %v807 = vld [vmem:[%s0 + $0x2f0] sm:$0xff]
    %v808 = vld [vmem:[%s0 + $0x2f8] sm:$0xff]
    %v809 = vld [vmem:[%s0 + $0x300] sm:$0xff]
    %v810 = vld [vmem:[%s0 + $0x308] sm:$0xff]
    %v811 = vld [vmem:[%s0 + $0x310] sm:$0xff]
    %v812 = vld [vmem:[%s0 + $0x318] sm:$0xff]
    %v813 = vld [vmem:[%s0 + $0x320] sm:$0xff]
    %v814 = vld [vmem:[%s0 + $0x328] sm:$0xff]
    %v815 = vld [vmem:[%s0 + $0x330] sm:$0xff]
    %v816 = vld [vmem:[%s0 + $0x338] sm:$0xff]
    %v817 = vld [vmem:[%s0 + $0x340] sm:$0xff]
    %v818 = vld [vmem:[%s0 + $0x348] sm:$0xff]
    %v819 = vld [vmem:[%s0 + $0x350] sm:$0xff]
    %v820 = vld [vmem:[%s0 + $0x358] sm:$0xff]
    %v821 = vld [vmem:[%s0 + $0x360] sm:$0xff]
    %v822 = vld [vmem:[%s0 + $0x368] sm:$0xff]
    %v823 = vld [vmem:[%s0 + $0x370] sm:$0xff]
    %v824 = vld [vmem:[%s0 + $0x378] sm:$0xff]
    %v825 = vld [vmem:[%s0 + $0x380] sm:$0xff]
    %v826 = vld [vmem:[%s0 + $0x388] sm:$0xff]
    %v827 = vld [vmem:[%s0 + $0x390] sm:$0xff]
    %v828 = vld [vmem:[%s0 + $0x398] sm:$0xff]
    %v829 = vld [vmem:[%s0 + $0x3a0] sm:$0xff]
    %v830 = vld [vmem:[%s0 + $0x3a8] sm:$0xff]
    %v831 = vld [vmem:[%s0 + $0x3b0] sm:$0xff]
    %v832 = vld [vmem:[%s0 + $0x3b8] sm:$0xff]
    %v833 = vld [vmem:[%s0 + $0x3c0] sm:$0xff]
    %v834 = vld [vmem:[%s0 + $0x3c8] sm:$0xff]
    %v835 = vld [vmem:[%s0 + $0x3d0] sm:$0xff]
    %v836 = vld [vmem:[%s0 + $0x3d8] sm:$0xff]
    %v837 = vld [vmem:[%s0 + $0x3e0] sm:$0xff]
    %v838 = vld [vmem:[%s0 + $0x3e8] sm:$0xff]
    %v839 = vld [vmem:[%s0 + $0x3f0] sm:$0xff]
    %v840 = vld [vmem:[%s0 + $0x3f8] sm:$0xff]
    %v841 = vld [vmem:[%s0 + $0x400] sm:$0xff]
    %v842 = vld [vmem:[%s0 + $0x408] sm:$0xff]
    %v843 = vld [vmem:[%s0 + $0x410] sm:$0xff]
    %v844 = vld [vmem:[%s0 + $0x418] sm:$0xff]
    %v845 = vld [vmem:[%s0 + $0x420] sm:$0xff]
    %v846 = vld [vmem:[%s0 + $0x428] sm:$0xff]
    %v847 = vld [vmem:[%s0 + $0x430] sm:$0xff]
    %v848 = vld [vmem:[%s0 + $0x438] sm:$0xff]
    %v849 = vld [vmem:[%s0 + $0x440] sm:$0xff]
    %v850 = vld [vmem:[%s0 + $0x448] sm:$0xff]
    %v851 = vld [vmem:[%s0 + $0x450] sm:$0xff]
    %v852 = vld [vmem:[%s0 + $0x458] sm:$0xff]
    %v853 = vld [vmem:[%s0 + $0x460] sm:$0xff]
    %v854 = vld [vmem:[%s0 + $0x468] sm:$0xff]
    %v855 = vld [vmem:[%s0 + $0x470] sm:$0xff]
    %v856 = vld [vmem:[%s0 + $0x478] sm:$0xff]
    %v857 = vld [vmem:[%s0 + $0x480] sm:$0xff]
    %v858 = vld [vmem:[%s0 + $0x488] sm:$0xff]
    %v859 = vld [vmem:[%s0 + $0x490] sm:$0xff]
    %v860 = vld [vmem:[%s0 + $0x498] sm:$0xff]
    %v861 = vld [vmem:[%s0 + $0x4a0] sm:$0xff]
    %v862 = vld [vmem:[%s0 + $0x4a8] sm:$0xff]
    %v863 = vld [vmem:[%s0 + $0x4b0] sm:$0xff]
    %v864 = vld [vmem:[%s0 + $0x4b8] sm:$0xff]
    %v865 = vld [vmem:[%s4] sm:$0xff]
    %v866 = vld [vmem:[%s4 + $0x8] sm:$0xff]
    %v867 = vld [vmem:[%s4 + $0x10] sm:$0xff]
    %v868 = vld [vmem:[%s4 + $0x18] sm:$0xff]
    %v869 = vld [vmem:[%s4 + $0x20] sm:$0xff]
    %v870 = vld [vmem:[%s4 + $0x28] sm:$0xff]
    %v871 = vld [vmem:[%s4 + $0x30] sm:$0xff]
    %v872 = vld [vmem:[%s4 + $0x38] sm:$0xff]
    %v873 = vld [vmem:[%s4 + $0x40] sm:$0xff]
    %v874 = vld [vmem:[%s4 + $0x48] sm:$0xff]
    %v875 = vld [vmem:[%s4 + $0x50] sm:$0xff]
    %v876 = vld [vmem:[%s4 + $0x58] sm:$0xff]
    %v877 = vld [vmem:[%s4 + $0x60] sm:$0xff]
    %v878 = vld [vmem:[%s4 + $0x68] sm:$0xff]
    %v879 = vld [vmem:[%s4 + $0x70] sm:$0xff]
    %v880 = vld [vmem:[%s4 + $0x78] sm:$0xff]
    %v881 = vld [vmem:[%s4 + $0x80] sm:$0xff]
    %v882 = vld [vmem:[%s4 + $0x88] sm:$0xff]
    %v883 = vld [vmem:[%s4 + $0x90] sm:$0xff]
    %v884 = vld [vmem:[%s4 + $0x98] sm:$0xff]
    %v885 = vld [vmem:[%s4 + $0xa0] sm:$0xff]
    %v886 = vld [vmem:[%s4 + $0xa8] sm:$0xff]
    %v887 = vld [vmem:[%s4 + $0xb0] sm:$0xff]
    %v888 = vld [vmem:[%s4 + $0xb8] sm:$0xff]
    %v889 = vld [vmem:[%s4 + $0xc0] sm:$0xff]
    %v890 = vld [vmem:[%s4 + $0xc8] sm:$0xff]
    %v891 = vld [vmem:[%s4 + $0xd0] sm:$0xff]
    %v892 = vld [vmem:[%s4 + $0xd8] sm:$0xff]
    %v893 = vld [vmem:[%s4 + $0xe0] sm:$0xff]
    %v894 = vld [vmem:[%s4 + $0xe8] sm:$0xff]
    %v895 = vld [vmem:[%s4 + $0xf0] sm:$0xff]
    %v896 = vld [vmem:[%s4 + $0xf8] sm:$0xff]
    %v897 = vld [vmem:[%s4 + $0x100] sm:$0xff]
    %v898 = vld [vmem:[%s4 + $0x108] sm:$0xff]
    %v899 = vld [vmem:[%s4 + $0x110] sm:$0xff]
    %v900 = vld [vmem:[%s4 + $0x118] sm:$0xff]
    %v901 = vld [vmem:[%s4 + $0x120] sm:$0xff]
    %v902 = vld [vmem:[%s4 + $0x128] sm:$0xff]
    %v903 = vld [vmem:[%s4 + $0x130] sm:$0xff]
    %v904 = vld [vmem:[%s4 + $0x138] sm:$0xff]
    %v905 = vld [vmem:[%s4 + $0x140] sm:$0xff]
    %v906 = vld [vmem:[%s4 + $0x148] sm:$0xff]
    %v907 = vld [vmem:[%s4 + $0x150] sm:$0xff]
    %v908 = vld [vmem:[%s4 + $0x158] sm:$0xff]
    %v909 = vld [vmem:[%s4 + $0x160] sm:$0xff]
    %v910 = vld [vmem:[%s4 + $0x168] sm:$0xff]
    %v911 = vld [vmem:[%s4 + $0x170] sm:$0xff]
    %v912 = vld [vmem:[%s4 + $0x178] sm:$0xff]
    %v913 = vld [vmem:[%s4 + $0x180] sm:$0xff]
    %v914 = vld [vmem:[%s4 + $0x188] sm:$0xff]
    %v915 = vld [vmem:[%s4 + $0x190] sm:$0xff]
    %v916 = vld [vmem:[%s4 + $0x198] sm:$0xff]
    %v917 = vld [vmem:[%s4 + $0x1a0] sm:$0xff]
    %v918 = vld [vmem:[%s4 + $0x1a8] sm:$0xff]
    %v919 = vld [vmem:[%s4 + $0x1b0] sm:$0xff]
    %v920 = vld [vmem:[%s4 + $0x1b8] sm:$0xff]
    %v921 = vld [vmem:[%s4 + $0x1c0] sm:$0xff]
    %v922 = vld [vmem:[%s4 + $0x1c8] sm:$0xff]
    %v923 = vld [vmem:[%s4 + $0x1d0] sm:$0xff]
    %v924 = vld [vmem:[%s4 + $0x1d8] sm:$0xff]
    %v925 = vld [vmem:[%s4 + $0x1e0] sm:$0xff]
    %v926 = vld [vmem:[%s4 + $0x1e8] sm:$0xff]
    %v927 = vld [vmem:[%s4 + $0x1f0] sm:$0xff]
    %v928 = vld [vmem:[%s4 + $0x1f8] sm:$0xff]
    %v929 = vld [vmem:[%s5] sm:$0xff]
    %v930 = vld [vmem:[%s5 + $0x8] sm:$0xff]
    %v931 = vld [vmem:[%s5 + $0x10] sm:$0xff]
    %v932 = vld [vmem:[%s5 + $0x18] sm:$0xff]
    %v933 = vld [vmem:[%s5 + $0x20] sm:$0xff]
    %v934 = vld [vmem:[%s5 + $0x28] sm:$0xff]
    %v935 = vld [vmem:[%s5 + $0x30] sm:$0xff]
    %v936 = vld [vmem:[%s5 + $0x38] sm:$0xff]
    %v937 = vld [vmem:[%s5 + $0x40] sm:$0xff]
    %v938 = vld [vmem:[%s5 + $0x48] sm:$0xff]
    %v939 = vld [vmem:[%s5 + $0x50] sm:$0xff]
    %v940 = vld [vmem:[%s5 + $0x58] sm:$0xff]
    %v941 = vld [vmem:[%s5 + $0x60] sm:$0xff]
    %v942 = vld [vmem:[%s5 + $0x68] sm:$0xff]
    %v943 = vld [vmem:[%s5 + $0x70] sm:$0xff]
    %v944 = vld [vmem:[%s5 + $0x78] sm:$0xff]
    %945 = vmatprep.subr.mxu0 0.0
    %946 = vmatpush1.msra.mxu0 %v929
    %947 = vmatprep.subr.mxu0 0.0
    %948 = vmatpush1.msra.mxu0 %v930
    %949 = vmatprep.subr.mxu0 0.0
    %950 = vmatpush1.msra.mxu0 %v931
    %951 = vmatprep.subr.mxu0 0.0
    %952 = vmatpush1.msra.mxu0 %v932
    %953 = vmatprep.subr.mxu0 0.0
    %954 = vmatpush1.msra.mxu0 %v933
    %955 = vmatprep.subr.mxu0 0.0
    %956 = vmatpush1.msra.mxu0 %v934
    %957 = vmatprep.subr.mxu0 0.0
    %958 = vmatpush1.msra.mxu0 %v935
    %959 = vmatprep.subr.mxu0 0.0
    %960 = vmatpush1.msra.mxu0 %v936
    %961 = vmatprep.subr.mxu0 0.0
    %962 = vmatpush1.msra.mxu0 %v937
    %963 = vmatprep.subr.mxu0 0.0
    %964 = vmatpush1.msra.mxu0 %v938
    %965 = vmatprep.subr.mxu0 0.0
    %966 = vmatpush1.msra.mxu0 %v939
    %967 = vmatprep.subr.mxu0 0.0
    %968 = vmatpush1.msra.mxu0 %v940
    %969 = vmatprep.subr.mxu0 0.0
    %970 = vmatpush1.msra.mxu0 %v941
    %971 = vmatprep.subr.mxu0 0.0
    %972 = vmatpush1.msra.mxu0 %v942
    %973 = vmatprep.subr.mxu0 0.0
    %974 = vmatpush1.msra.mxu0 %v943
    %975 = vmatprep.subr.mxu0 0.0
    %976 = vmatpush1.msra.mxu0 %v944
    %977 = vmatprep.subr.mxu0 0.0
    %978 = vmatpush1.msra.mxu0 0.0
    %979 = vmatprep.subr.mxu0 0.0
    %980 = vmatpush1.msra.mxu0 0.0
    %981 = vmatprep.subr.mxu0 0.0
    %982 = vmatpush1.msra.mxu0 0.0
    %983 = vmatprep.subr.mxu0 0.0
    %984 = vmatpush1.msra.mxu0 0.0
    %985 = vmatprep.subr.mxu0 0.0
    %986 = vmatpush1.msra.mxu0 0.0
    %987 = vmatprep.subr.mxu0 0.0
    %988 = vmatpush1.msra.mxu0 0.0
    %989 = vmatprep.subr.mxu0 0.0
    %990 = vmatpush1.msra.mxu0 0.0
    %991 = vmatprep.subr.mxu0 0.0
    %992 = vmatpush1.msra.mxu0 0.0
    %993 = vmatprep.subr.mxu0 0.0
    %994 = vmatpush1.msra.mxu0 0.0
    %995 = vmatprep.subr.mxu0 0.0
    %996 = vmatpush1.msra.mxu0 0.0
    %997 = vmatprep.subr.mxu0 0.0
    %998 = vmatpush1.msra.mxu0 0.0
    %999 = vmatprep.subr.mxu0 0.0
    %1000 = vmatpush1.msra.mxu0 0.0
    %1001 = vmatprep.subr.mxu0 0.0
    %1002 = vmatpush1.msra.mxu0 0.0
    %1003 = vmatprep.subr.mxu0 0.0
    %1004 = vmatpush1.msra.mxu0 0.0
    %1005 = vmatprep.subr.mxu0 0.0
    %1006 = vmatpush1.msra.mxu0 0.0
    %1007 = vmatprep.subr.mxu0 0.0
    %1008 = vmatpush1.msra.mxu0 0.0
    %1009 = vmatprep.mubr.f32.mxu0 0.0
    %1010 = vmatmul.mubr.f32.gmra.mrb[0].mxu0 %v675
    %v1011 = vpop.f32.mrb[0].mxu0
    %v1012 = vadd.f32 0.0, %v1011
    %v1013 = vpop.f32.mrb[0].mxu0
    %1014 = vmatprep.mubr.f32.mxu0 0.0
    %1015 = vmatmul.mubr.f32.gmra.mrb[0].mxu0 %v676
    %v1016 = vpop.f32.mrb[0].mxu0
    %v1017 = vadd.f32 0.0, %v1016
    %v1018 = vpop.f32.mrb[0].mxu0
    %1019 = vmatprep.mubr.f32.mxu0 0.0
    %1020 = vmatmul.mubr.f32.gmra.mrb[0].mxu0 %v677
    %v1021 = vpop.f32.mrb[0].mxu0
    %v1022 = vadd.f32 0.0, %v1021
    %v1023 = vpop.f32.mrb[0].mxu0
    %1024 = vmatprep.mubr.f32.mxu0 0.0
    %1025 = vmatmul.mubr.f32.gmra.mrb[0].mxu0 %v678
    %v1026 = vpop.f32.mrb[0].mxu0
    %v1027 = vadd.f32 0.0, %v1026
    %v1028 = vpop.f32.mrb[0].mxu0
    %1029 = vmatprep.mubr.f32.mxu0 0.0
    %1030 = vmatmul.mubr.f32.gmra.mrb[0].mxu0 %v679
    %v1031 = vpop.f32.mrb[0].mxu0
    %v1032 = vadd.f32 0.0, %v1031
    %v1033 = vpop.f32.mrb[0].mxu0
    %1034 = vmatprep.mubr.f32.mxu0 0.0
    %1035 = vmatmul.mubr.f32.gmra.mrb[0].mxu0 %v680
    %v1036 = vpop.f32.mrb[0].mxu0
    %v1037 = vadd.f32 0.0, %v1036
    %v1038 = vpop.f32.mrb[0].mxu0
    %1039 = vmatprep.mubr.f32.mxu0 0.0
    %1040 = vmatmul.mubr.f32.gmra.mrb[0].mxu0 %v681
    %v1041 = vpop.f32.mrb[0].mxu0
    %v1042 = vadd.f32 0.0, %v1041
    %v1043 = vpop.f32.mrb[0].mxu0
    %1044 = vmatprep.mubr.f32.mxu0 0.0
    %1045 = vmatmul.mubr.f32.gmra.mrb[0].mxu0 %v682
    %v1046 = vpop.f32.mrb[0].mxu0
    %v1047 = vadd.f32 0.0, %v1046
    %v1048 = vpop.f32.mrb[0].mxu0
    %1049 = vmatprep.mubr.f32.mxu0 0.0
    %1050 = vmatmul.mubr.f32.gmra.mrb[0].mxu0 %v683
    %v1051 = vpop.f32.mrb[0].mxu0
    %v1052 = vadd.f32 0.0, %v1051
    %v1053 = vpop.f32.mrb[0].mxu0
    %1054 = vmatprep.mubr.f32.mxu0 0.0
    %1055 = vmatmul.mubr.f32.gmra.mrb[0].mxu0 %v684
    %v1056 = vpop.f32.mrb[0].mxu0
    %v1057 = vadd.f32 0.0, %v1056
    %v1058 = vpop.f32.mrb[0].mxu0
    %1059 = vmatprep.mubr.f32.mxu0 0.0
    %1060 = vmatmul.mubr.f32.gmra.mrb[0].mxu0 %v685
    %v1061 = vpop.f32.mrb[0].mxu0
    %v1062 = vadd.f32 0.0, %v1061
    %v1063 = vpop.f32.mrb[0].mxu0
    %1064 = vmatprep.mubr.f32.mxu0 0.0
    %1065 = vmatmul.mubr.f32.gmra.mrb[0].mxu0 %v686
    %v1066 = vpop.f32.mrb[0].mxu0
    %v1067 = vadd.f32 0.0, %v1066
    %v1068 = vpop.f32.mrb[0].mxu0
    %1069 = vmatprep.mubr.f32.mxu0 0.0
    %1070 = vmatmul.mubr.f32.gmra.mrb[0].mxu0 %v687
    %v1071 = vpop.f32.mrb[0].mxu0
    %v1072 = vadd.f32 0.0, %v1071
    %v1073 = vpop.f32.mrb[0].mxu0
    %1074 = vmatprep.mubr.f32.mxu0 0.0
    %1075 = vmatmul.mubr.f32.gmra.mrb[0].mxu0 %v688
    %v1076 = vpop.f32.mrb[0].mxu0
    %v1077 = vadd.f32 0.0, %v1076
    %v1078 = vpop.f32.mrb[0].mxu0
    %1079 = vmatprep.mubr.f32.mxu0 0.0
    %1080 = vmatmul.mubr.f32.gmra.mrb[0].mxu0 %v689
    %v1081 = vpop.f32.mrb[0].mxu0
    %v1082 = vadd.f32 0.0, %v1081
    %v1083 = vpop.f32.mrb[0].mxu0
    %1084 = vmatprep.mubr.f32.mxu0 0.0
    %1085 = vmatmul.mubr.f32.gmra.mrb[0].mxu0 %v690
    %v1086 = vpop.f32.mrb[0].mxu0
    %v1087 = vadd.f32 0.0, %v1086
    %v1088 = vpop.f32.mrb[0].mxu0
    %1089 = vmatprep.mubr.f32.mxu0 0.0
    %1090 = vmatmul.mubr.f32.gmra.mrb[0].mxu0 %v691
    %v1091 = vpop.f32.mrb[0].mxu0
    %v1092 = vadd.f32 0.0, %v1091
    %v1093 = vpop.f32.mrb[0].mxu0
    %1094 = vmatprep.mubr.f32.mxu0 0.0
    %1095 = vmatmul.mubr.f32.gmra.mrb[0].mxu0 %v692
    %v1096 = vpop.f32.mrb[0].mxu0
    %v1097 = vadd.f32 0.0, %v1096
    %v1098 = vpop.f32.mrb[0].mxu0
    %1099 = vmatprep.mubr.f32.mxu0 0.0
    %1100 = vmatmul.mubr.f32.gmra.mrb[0].mxu0 %v693
    %v1101 = vpop.f32.mrb[0].mxu0
    %v1102 = vadd.f32 0.0, %v1101
    %v1103 = vpop.f32.mrb[0].mxu0
    %1104 = vmatprep.mubr.f32.mxu0 0.0
    %1105 = vmatmul.mubr.f32.gmra.mrb[0].mxu0 %v694
    %v1106 = vpop.f32.mrb[0].mxu0
    %v1107 = vadd.f32 0.0, %v1106
    %v1108 = vpop.f32.mrb[0].mxu0
    %1109 = vmatprep.mubr.f32.mxu0 0.0
    %1110 = vmatmul.mubr.f32.gmra.mrb[0].mxu0 %v695
    %v1111 = vpop.f32.mrb[0].mxu0
    %v1112 = vadd.f32 0.0, %v1111
    %v1113 = vpop.f32.mrb[0].mxu0
    %1114 = vmatprep.mubr.f32.mxu0 0.0
    %1115 = vmatmul.mubr.f32.gmra.mrb[0].mxu0 %v696
    %v1116 = vpop.f32.mrb[0].mxu0
    %v1117 = vadd.f32 0.0, %v1116
    %v1118 = vpop.f32.mrb[0].mxu0
    %1119 = vmatprep.mubr.f32.mxu0 0.0
    %1120 = vmatmul.mubr.f32.gmra.mrb[0].mxu0 %v697
    %v1121 = vpop.f32.mrb[0].mxu0
    %v1122 = vadd.f32 0.0, %v1121
    %v1123 = vpop.f32.mrb[0].mxu0
    %1124 = vmatprep.mubr.f32.mxu0 0.0
    %1125 = vmatmul.mubr.f32.gmra.mrb[0].mxu0 %v698
    %v1126 = vpop.f32.mrb[0].mxu0
    %v1127 = vadd.f32 0.0, %v1126
    %v1128 = vpop.f32.mrb[0].mxu0
    %1129 = vmatprep.mubr.f32.mxu0 0.0
    %1130 = vmatmul.mubr.f32.gmra.mrb[0].mxu0 %v699
    %v1131 = vpop.f32.mrb[0].mxu0
    %v1132 = vadd.f32 0.0, %v1131
    %v1133 = vpop.f32.mrb[0].mxu0
    %1134 = vmatprep.mubr.f32.mxu0 0.0
    %1135 = vmatmul.mubr.f32.gmra.mrb[0].mxu0 %v700
    %v1136 = vpop.f32.mrb[0].mxu0
    %v1137 = vadd.f32 0.0, %v1136
    %v1138 = vpop.f32.mrb[0].mxu0
    %1139 = vmatprep.mubr.f32.mxu0 0.0
    %1140 = vmatmul.mubr.f32.gmra.mrb[0].mxu0 %v701
    %v1141 = vpop.f32.mrb[0].mxu0
    %v1142 = vadd.f32 0.0, %v1141
    %v1143 = vpop.f32.mrb[0].mxu0
    %1144 = vmatprep.mubr.f32.mxu0 0.0
    %1145 = vmatmul.mubr.f32.gmra.mrb[0].mxu0 %v702
    %v1146 = vpop.f32.mrb[0].mxu0
    %v1147 = vadd.f32 0.0, %v1146
    %v1148 = vpop.f32.mrb[0].mxu0
    %1149 = vmatprep.mubr.f32.mxu0 0.0
    %1150 = vmatmul.mubr.f32.gmra.mrb[0].mxu0 %v703
    %v1151 = vpop.f32.mrb[0].mxu0
    %v1152 = vadd.f32 0.0, %v1151
    %v1153 = vpop.f32.mrb[0].mxu0
    %1154 = vmatprep.mubr.f32.mxu0 0.0
    %1155 = vmatmul.mubr.f32.gmra.mrb[0].mxu0 %v704
    %v1156 = vpop.f32.mrb[0].mxu0
    %v1157 = vadd.f32 0.0, %v1156
    %v1158 = vpop.f32.mrb[0].mxu0
    %1159 = vmatprep.mubr.f32.mxu0 0.0
    %1160 = vmatmul.mubr.f32.gmra.mrb[0].mxu0 %v705
    %v1161 = vpop.f32.mrb[0].mxu0
    %v1162 = vadd.f32 0.0, %v1161
    %v1163 = vpop.f32.mrb[0].mxu0
    %1164 = vmatprep.mubr.f32.mxu0 0.0
    %1165 = vmatmul.mubr.f32.gmra.mrb[0].mxu0 %v706
    %v1166 = vpop.f32.mrb[0].mxu0
    %v1167 = vadd.f32 0.0, %v1166
    %v1168 = vpop.f32.mrb[0].mxu0
    %1169 = vmatprep.mubr.f32.mxu0 0.0
    %1170 = vmatmul.mubr.f32.gmra.mrb[0].mxu0 %v707
    %v1171 = vpop.f32.mrb[0].mxu0
    %v1172 = vadd.f32 0.0, %v1171
    %v1173 = vpop.f32.mrb[0].mxu0
    %1174 = vmatprep.mubr.f32.mxu0 0.0
    %1175 = vmatmul.mubr.f32.gmra.mrb[0].mxu0 %v708
    %v1176 = vpop.f32.mrb[0].mxu0
    %v1177 = vadd.f32 0.0, %v1176
    %v1178 = vpop.f32.mrb[0].mxu0
    %1179 = vmatprep.mubr.f32.mxu0 0.0
    %1180 = vmatmul.mubr.f32.gmra.mrb[0].mxu0 %v709
    %v1181 = vpop.f32.mrb[0].mxu0
    %v1182 = vadd.f32 0.0, %v1181
    %v1183 = vpop.f32.mrb[0].mxu0
    %1184 = vmatprep.mubr.f32.mxu0 0.0
    %1185 = vmatmul.mubr.f32.gmra.mrb[0].mxu0 %v710
    %v1186 = vpop.f32.mrb[0].mxu0
    %v1187 = vadd.f32 0.0, %v1186
    %v1188 = vpop.f32.mrb[0].mxu0
    %1189 = vmatprep.mubr.f32.mxu0 0.0
    %1190 = vmatmul.mubr.f32.gmra.mrb[0].mxu0 %v711
    %v1191 = vpop.f32.mrb[0].mxu0
    %v1192 = vadd.f32 0.0, %v1191
    %v1193 = vpop.f32.mrb[0].mxu0
    %1194 = vmatprep.mubr.f32.mxu0 0.0
    %1195 = vmatmul.mubr.f32.gmra.mrb[0].mxu0 %v712
    %v1196 = vpop.f32.mrb[0].mxu0
    %v1197 = vadd.f32 0.0, %v1196
    %v1198 = vpop.f32.mrb[0].mxu0
    %1199 = vdwg.mxu0
    %1200 = vmatprep.subr.mxu0 0.0
    %1201 = vmatpush1.msra.mxu0 %v865
    %1202 = vmatprep.subr.mxu0 0.0
    %1203 = vmatpush1.msra.mxu0 %v866
    %1204 = vmatprep.subr.mxu0 0.0
    %1205 = vmatpush1.msra.mxu0 %v867
    %1206 = vmatprep.subr.mxu0 0.0
    %1207 = vmatpush1.msra.mxu0 %v868
    %1208 = vmatprep.subr.mxu0 0.0
    %1209 = vmatpush1.msra.mxu0 %v869
    %1210 = vmatprep.subr.mxu0 0.0
    %1211 = vmatpush1.msra.mxu0 %v870
    %1212 = vmatprep.subr.mxu0 0.0
    %1213 = vmatpush1.msra.mxu0 %v871
    %1214 = vmatprep.subr.mxu0 0.0
    %1215 = vmatpush1.msra.mxu0 %v872
    %1216 = vmatprep.subr.mxu0 0.0
    %1217 = vmatpush1.msra.mxu0 %v873
    %1218 = vmatprep.subr.mxu0 0.0
    %1219 = vmatpush1.msra.mxu0 %v874
    %1220 = vmatprep.subr.mxu0 0.0
    %1221 = vmatpush1.msra.mxu0 %v875
    %1222 = vmatprep.subr.mxu0 0.0
    %1223 = vmatpush1.msra.mxu0 %v876
    %1224 = vmatprep.subr.mxu0 0.0
    %1225 = vmatpush1.msra.mxu0 %v877
    %1226 = vmatprep.subr.mxu0 0.0
    %1227 = vmatpush1.msra.mxu0 %v878
    %1228 = vmatprep.subr.mxu0 0.0
    %1229 = vmatpush1.msra.mxu0 %v879
    %1230 = vmatprep.subr.mxu0 0.0
    %1231 = vmatpush1.msra.mxu0 %v880
    %1232 = vmatprep.subr.mxu0 0.0
    %1233 = vmatpush1.msra.mxu0 %v881
    %1234 = vmatprep.subr.mxu0 0.0
    %1235 = vmatpush1.msra.mxu0 %v882
    %1236 = vmatprep.subr.mxu0 0.0
    %1237 = vmatpush1.msra.mxu0 %v883
    %1238 = vmatprep.subr.mxu0 0.0
    %1239 = vmatpush1.msra.mxu0 %v884
    %1240 = vmatprep.subr.mxu0 0.0
    %1241 = vmatpush1.msra.mxu0 %v885
    %1242 = vmatprep.subr.mxu0 0.0
    %1243 = vmatpush1.msra.mxu0 %v886
    %1244 = vmatprep.subr.mxu0 0.0
    %1245 = vmatpush1.msra.mxu0 %v887
    %1246 = vmatprep.subr.mxu0 0.0
    %1247 = vmatpush1.msra.mxu0 %v888
    %1248 = vmatprep.subr.mxu0 0.0
    %1249 = vmatpush1.msra.mxu0 %v889
    %1250 = vmatprep.subr.mxu0 0.0
    %1251 = vmatpush1.msra.mxu0 %v890
    %1252 = vmatprep.subr.mxu0 0.0
    %1253 = vmatpush1.msra.mxu0 %v891
    %1254 = vmatprep.subr.mxu0 0.0
    %1255 = vmatpush1.msra.mxu0 %v892
    %1256 = vmatprep.subr.mxu0 0.0
    %1257 = vmatpush1.msra.mxu0 %v893
    %1258 = vmatprep.subr.mxu0 0.0
    %1259 = vmatpush1.msra.mxu0 %v894
    %1260 = vmatprep.subr.mxu0 0.0
    %1261 = vmatpush1.msra.mxu0 %v895
    %1262 = vmatprep.subr.mxu0 0.0
    %1263 = vmatpush1.msra.mxu0 %v896
    %1264 = vmatprep.mubr.f32.mxu0 %v714
    %1265 = vmatmul.mubr.f32.gmra.mrb[0].mxu0 %v713
    %v1266 = vpop.f32.mrb[0].mxu0
    %v1267 = vadd.f32 %v1012, %v1266
    %v1268 = vpop.f32.mrb[0].mxu0
    %1269 = vmatprep.mubr.f32.mxu0 %v718
    %1270 = vmatmul.mubr.f32.gmra.mrb[0].mxu0 %v717
    %v1271 = vpop.f32.mrb[0].mxu0
    %v1272 = vadd.f32 %v1017, %v1271
    %v1273 = vpop.f32.mrb[0].mxu0
    %1274 = vmatprep.mubr.f32.mxu0 %v722
    %1275 = vmatmul.mubr.f32.gmra.mrb[0].mxu0 %v721
    %v1276 = vpop.f32.mrb[0].mxu0
    %v1277 = vadd.f32 %v1022, %v1276
    %v1278 = vpop.f32.mrb[0].mxu0
    %1279 = vmatprep.mubr.f32.mxu0 %v726
    %1280 = vmatmul.mubr.f32.gmra.mrb[0].mxu0 %v725
    %v1281 = vpop.f32.mrb[0].mxu0
    %v1282 = vadd.f32 %v1027, %v1281
    %v1283 = vpop.f32.mrb[0].mxu0
    %1284 = vmatprep.mubr.f32.mxu0 %v730
    %1285 = vmatmul.mubr.f32.gmra.mrb[0].mxu0 %v729
    %v1286 = vpop.f32.mrb[0].mxu0
    %v1287 = vadd.f32 %v1032, %v1286
    %v1288 = vpop.f32.mrb[0].mxu0
    %1289 = vmatprep.mubr.f32.mxu0 %v734
    %1290 = vmatmul.mubr.f32.gmra.mrb[0].mxu0 %v733
    %v1291 = vpop.f32.mrb[0].mxu0
    %v1292 = vadd.f32 %v1037, %v1291
    %v1293 = vpop.f32.mrb[0].mxu0
    %1294 = vmatprep.mubr.f32.mxu0 %v738
    %1295 = vmatmul.mubr.f32.gmra.mrb[0].mxu0 %v737
    %v1296 = vpop.f32.mrb[0].mxu0
    %v1297 = vadd.f32 %v1042, %v1296
    %v1298 = vpop.f32.mrb[0].mxu0
    %1299 = vmatprep.mubr.f32.mxu0 %v742
    %1300 = vmatmul.mubr.f32.gmra.mrb[0].mxu0 %v741
    %v1301 = vpop.f32.mrb[0].mxu0
    %v1302 = vadd.f32 %v1047, %v1301
    %v1303 = vpop.f32.mrb[0].mxu0
    %1304 = vmatprep.mubr.f32.mxu0 %v746
    %1305 = vmatmul.mubr.f32.gmra.mrb[0].mxu0 %v745
    %v1306 = vpop.f32.mrb[0].mxu0
    %v1307 = vadd.f32 %v1052, %v1306
    %v1308 = vpop.f32.mrb[0].mxu0
    %1309 = vmatprep.mubr.f32.mxu0 %v750
    %1310 = vmatmul.mubr.f32.gmra.mrb[0].mxu0 %v749
    %v1311 = vpop.f32.mrb[0].mxu0
    %v1312 = vadd.f32 %v1057, %v1311
    %v1313 = vpop.f32.mrb[0].mxu0
    %1314 = vmatprep.mubr.f32.mxu0 %v754
    %1315 = vmatmul.mubr.f32.gmra.mrb[0].mxu0 %v753
    %v1316 = vpop.f32.mrb[0].mxu0
    %v1317 = vadd.f32 %v1062, %v1316
    %v1318 = vpop.f32.mrb[0].mxu0
    %1319 = vmatprep.mubr.f32.mxu0 %v758
    %1320 = vmatmul.mubr.f32.gmra.mrb[0].mxu0 %v757
    %v1321 = vpop.f32.mrb[0].mxu0
    %v1322 = vadd.f32 %v1067, %v1321
    %v1323 = vpop.f32.mrb[0].mxu0
    %1324 = vmatprep.mubr.f32.mxu0 %v762
    %1325 = vmatmul.mubr.f32.gmra.mrb[0].mxu0 %v761
    %v1326 = vpop.f32.mrb[0].mxu0
    %v1327 = vadd.f32 %v1072, %v1326
    %v1328 = vpop.f32.mrb[0].mxu0
    %1329 = vmatprep.mubr.f32.mxu0 %v766
    %1330 = vmatmul.mubr.f32.gmra.mrb[0].mxu0 %v765
    %v1331 = vpop.f32.mrb[0].mxu0
    %v1332 = vadd.f32 %v1077, %v1331
    %v1333 = vpop.f32.mrb[0].mxu0
    %1334 = vmatprep.mubr.f32.mxu0 %v770
    %1335 = vmatmul.mubr.f32.gmra.mrb[0].mxu0 %v769
    %v1336 = vpop.f32.mrb[0].mxu0
    %v1337 = vadd.f32 %v1082, %v1336
    %v1338 = vpop.f32.mrb[0].mxu0
    %1339 = vmatprep.mubr.f32.mxu0 %v774
    %1340 = vmatmul.mubr.f32.gmra.mrb[0].mxu0 %v773
    %v1341 = vpop.f32.mrb[0].mxu0
    %v1342 = vadd.f32 %v1087, %v1341
    %v1343 = vpop.f32.mrb[0].mxu0
    %1344 = vmatprep.mubr.f32.mxu0 %v778
    %1345 = vmatmul.mubr.f32.gmra.mrb[0].mxu0 %v777
    %v1346 = vpop.f32.mrb[0].mxu0
    %v1347 = vadd.f32 %v1092, %v1346
    %v1348 = vpop.f32.mrb[0].mxu0
    %1349 = vmatprep.mubr.f32.mxu0 %v782
    %1350 = vmatmul.mubr.f32.gmra.mrb[0].mxu0 %v781
    %v1351 = vpop.f32.mrb[0].mxu0
    %v1352 = vadd.f32 %v1097, %v1351
    %v1353 = vpop.f32.mrb[0].mxu0
    %1354 = vmatprep.mubr.f32.mxu0 %v786
    %1355 = vmatmul.mubr.f32.gmra.mrb[0].mxu0 %v785
    %v1356 = vpop.f32.mrb[0].mxu0
    %v1357 = vadd.f32 %v1102, %v1356
    %v1358 = vpop.f32.mrb[0].mxu0
    %1359 = vmatprep.mubr.f32.mxu0 %v790
    %1360 = vmatmul.mubr.f32.gmra.mrb[0].mxu0 %v789
    %v1361 = vpop.f32.mrb[0].mxu0
    %v1362 = vadd.f32 %v1107, %v1361
    %v1363 = vpop.f32.mrb[0].mxu0
    %1364 = vmatprep.mubr.f32.mxu0 %v794
    %1365 = vmatmul.mubr.f32.gmra.mrb[0].mxu0 %v793
    %v1366 = vpop.f32.mrb[0].mxu0
    %v1367 = vadd.f32 %v1112, %v1366
    %v1368 = vpop.f32.mrb[0].mxu0
    %1369 = vmatprep.mubr.f32.mxu0 %v798
    %1370 = vmatmul.mubr.f32.gmra.mrb[0].mxu0 %v797
    %v1371 = vpop.f32.mrb[0].mxu0
    %v1372 = vadd.f32 %v1117, %v1371
    %v1373 = vpop.f32.mrb[0].mxu0
    %1374 = vmatprep.mubr.f32.mxu0 %v802
    %1375 = vmatmul.mubr.f32.gmra.mrb[0].mxu0 %v801
    %v1376 = vpop.f32.mrb[0].mxu0
    %v1377 = vadd.f32 %v1122, %v1376
    %v1378 = vpop.f32.mrb[0].mxu0
    %1379 = vmatprep.mubr.f32.mxu0 %v806
    %1380 = vmatmul.mubr.f32.gmra.mrb[0].mxu0 %v805
    %v1381 = vpop.f32.mrb[0].mxu0
    %v1382 = vadd.f32 %v1127, %v1381
    %v1383 = vpop.f32.mrb[0].mxu0
    %1384 = vmatprep.mubr.f32.mxu0 %v810
    %1385 = vmatmul.mubr.f32.gmra.mrb[0].mxu0 %v809
    %v1386 = vpop.f32.mrb[0].mxu0
    %v1387 = vadd.f32 %v1132, %v1386
    %v1388 = vpop.f32.mrb[0].mxu0
    %1389 = vmatprep.mubr.f32.mxu0 %v814
    %1390 = vmatmul.mubr.f32.gmra.mrb[0].mxu0 %v813
    %v1391 = vpop.f32.mrb[0].mxu0
    %v1392 = vadd.f32 %v1137, %v1391
    %v1393 = vpop.f32.mrb[0].mxu0
    %1394 = vmatprep.mubr.f32.mxu0 %v818
    %1395 = vmatmul.mubr.f32.gmra.mrb[0].mxu0 %v817
    %v1396 = vpop.f32.mrb[0].mxu0
    %v1397 = vadd.f32 %v1142, %v1396
    %v1398 = vpop.f32.mrb[0].mxu0
    %1399 = vmatprep.mubr.f32.mxu0 %v822
    %1400 = vmatmul.mubr.f32.gmra.mrb[0].mxu0 %v821
    %v1401 = vpop.f32.mrb[0].mxu0
    %v1402 = vadd.f32 %v1147, %v1401
    %v1403 = vpop.f32.mrb[0].mxu0
    %1404 = vmatprep.mubr.f32.mxu0 %v826
    %1405 = vmatmul.mubr.f32.gmra.mrb[0].mxu0 %v825
    %v1406 = vpop.f32.mrb[0].mxu0
    %v1407 = vadd.f32 %v1152, %v1406
    %v1408 = vpop.f32.mrb[0].mxu0
    %1409 = vmatprep.mubr.f32.mxu0 %v830
    %1410 = vmatmul.mubr.f32.gmra.mrb[0].mxu0 %v829
    %v1411 = vpop.f32.mrb[0].mxu0
    %v1412 = vadd.f32 %v1157, %v1411
    %v1413 = vpop.f32.mrb[0].mxu0
    %1414 = vmatprep.mubr.f32.mxu0 %v834
    %1415 = vmatmul.mubr.f32.gmra.mrb[0].mxu0 %v833
    %v1416 = vpop.f32.mrb[0].mxu0
    %v1417 = vadd.f32 %v1162, %v1416
    %v1418 = vpop.f32.mrb[0].mxu0
    %1419 = vmatprep.mubr.f32.mxu0 %v838
    %1420 = vmatmul.mubr.f32.gmra.mrb[0].mxu0 %v837
    %v1421 = vpop.f32.mrb[0].mxu0
    %v1422 = vadd.f32 %v1167, %v1421
    %v1423 = vpop.f32.mrb[0].mxu0
    %1424 = vmatprep.mubr.f32.mxu0 %v842
    %1425 = vmatmul.mubr.f32.gmra.mrb[0].mxu0 %v841
    %v1426 = vpop.f32.mrb[0].mxu0
    %v1427 = vadd.f32 %v1172, %v1426
    %v1428 = vpop.f32.mrb[0].mxu0
    %1429 = vmatprep.mubr.f32.mxu0 %v846
    %1430 = vmatmul.mubr.f32.gmra.mrb[0].mxu0 %v845
    %v1431 = vpop.f32.mrb[0].mxu0
    %v1432 = vadd.f32 %v1177, %v1431
    %v1433 = vpop.f32.mrb[0].mxu0
    %1434 = vmatprep.mubr.f32.mxu0 %v850
    %1435 = vmatmul.mubr.f32.gmra.mrb[0].mxu0 %v849
    %v1436 = vpop.f32.mrb[0].mxu0
    %v1437 = vadd.f32 %v1182, %v1436
    %v1438 = vpop.f32.mrb[0].mxu0
    %1439 = vmatprep.mubr.f32.mxu0 %v854
    %1440 = vmatmul.mubr.f32.gmra.mrb[0].mxu0 %v853
    %v1441 = vpop.f32.mrb[0].mxu0
    %v1442 = vadd.f32 %v1187, %v1441
    %v1443 = vpop.f32.mrb[0].mxu0
    %1444 = vmatprep.mubr.f32.mxu0 %v858
    %1445 = vmatmul.mubr.f32.gmra.mrb[0].mxu0 %v857
    %v1446 = vpop.f32.mrb[0].mxu0
    %v1447 = vadd.f32 %v1192, %v1446
    %v1448 = vpop.f32.mrb[0].mxu0
    %1449 = vmatprep.mubr.f32.mxu0 %v862
    %1450 = vmatmul.mubr.f32.gmra.mrb[0].mxu0 %v861
    %v1451 = vpop.f32.mrb[0].mxu0
    %v1452 = vadd.f32 %v1197, %v1451
    %v1453 = vpop.f32.mrb[0].mxu0
    %1454 = vdwg.mxu0
    %1455 = vmatprep.subr.mxu0 0.0
    %1456 = vmatpush1.msra.mxu0 %v897
    %1457 = vmatprep.subr.mxu0 0.0
    %1458 = vmatpush1.msra.mxu0 %v898
    %1459 = vmatprep.subr.mxu0 0.0
    %1460 = vmatpush1.msra.mxu0 %v899
    %1461 = vmatprep.subr.mxu0 0.0
    %1462 = vmatpush1.msra.mxu0 %v900
    %1463 = vmatprep.subr.mxu0 0.0
    %1464 = vmatpush1.msra.mxu0 %v901
    %1465 = vmatprep.subr.mxu0 0.0
    %1466 = vmatpush1.msra.mxu0 %v902
    %1467 = vmatprep.subr.mxu0 0.0
    %1468 = vmatpush1.msra.mxu0 %v903
    %1469 = vmatprep.subr.mxu0 0.0
    %1470 = vmatpush1.msra.mxu0 %v904
    %1471 = vmatprep.subr.mxu0 0.0
    %1472 = vmatpush1.msra.mxu0 %v905
    %1473 = vmatprep.subr.mxu0 0.0
    %1474 = vmatpush1.msra.mxu0 %v906
    %1475 = vmatprep.subr.mxu0 0.0
    %1476 = vmatpush1.msra.mxu0 %v907
    %1477 = vmatprep.subr.mxu0 0.0
    %1478 = vmatpush1.msra.mxu0 %v908
    %1479 = vmatprep.subr.mxu0 0.0
    %1480 = vmatpush1.msra.mxu0 %v909
    %1481 = vmatprep.subr.mxu0 0.0
    %1482 = vmatpush1.msra.mxu0 %v910
    %1483 = vmatprep.subr.mxu0 0.0
    %1484 = vmatpush1.msra.mxu0 %v911
    %1485 = vmatprep.subr.mxu0 0.0
    %1486 = vmatpush1.msra.mxu0 %v912
    %1487 = vmatprep.subr.mxu0 0.0
    %1488 = vmatpush1.msra.mxu0 %v913
    %1489 = vmatprep.subr.mxu0 0.0
    %1490 = vmatpush1.msra.mxu0 %v914
    %1491 = vmatprep.subr.mxu0 0.0
    %1492 = vmatpush1.msra.mxu0 %v915
    %1493 = vmatprep.subr.mxu0 0.0
    %1494 = vmatpush1.msra.mxu0 %v916
    %1495 = vmatprep.subr.mxu0 0.0
    %1496 = vmatpush1.msra.mxu0 %v917
    %1497 = vmatprep.subr.mxu0 0.0
    %1498 = vmatpush1.msra.mxu0 %v918
    %1499 = vmatprep.subr.mxu0 0.0
    %1500 = vmatpush1.msra.mxu0 %v919
    %1501 = vmatprep.subr.mxu0 0.0
    %1502 = vmatpush1.msra.mxu0 %v920
    %1503 = vmatprep.subr.mxu0 0.0
    %1504 = vmatpush1.msra.mxu0 %v921
    %1505 = vmatprep.subr.mxu0 0.0
    %1506 = vmatpush1.msra.mxu0 %v922
    %1507 = vmatprep.subr.mxu0 0.0
    %1508 = vmatpush1.msra.mxu0 %v923
    %1509 = vmatprep.subr.mxu0 0.0
    %1510 = vmatpush1.msra.mxu0 %v924
    %1511 = vmatprep.subr.mxu0 0.0
    %1512 = vmatpush1.msra.mxu0 %v925
    %1513 = vmatprep.subr.mxu0 0.0
    %1514 = vmatpush1.msra.mxu0 %v926
    %1515 = vmatprep.subr.mxu0 0.0
    %1516 = vmatpush1.msra.mxu0 %v927
    %1517 = vmatprep.subr.mxu0 0.0
    %1518 = vmatpush1.msra.mxu0 %v928
    %1519 = vmatprep.mubr.f32.mxu0 %v716
    %1520 = vmatmul.mubr.f32.gmra.mrb[0].mxu0 %v715
    %v1521 = vpop.f32.mrb[0].mxu0
    %v1522 = vadd.f32 %v1267, %v1521
    %v1523 = vpop.f32.mrb[0].mxu0
    %1524 = vmatprep.mubr.f32.mxu0 %v720
    %1525 = vmatmul.mubr.f32.gmra.mrb[0].mxu0 %v719
    %v1526 = vpop.f32.mrb[0].mxu0
    %v1527 = vadd.f32 %v1272, %v1526
    %v1528 = vpop.f32.mrb[0].mxu0
    %1529 = vmatprep.mubr.f32.mxu0 %v724
    %1530 = vmatmul.mubr.f32.gmra.mrb[0].mxu0 %v723
    %v1531 = vpop.f32.mrb[0].mxu0
    %v1532 = vadd.f32 %v1277, %v1531
    %v1533 = vpop.f32.mrb[0].mxu0
    %1534 = vmatprep.mubr.f32.mxu0 %v728
    %1535 = vmatmul.mubr.f32.gmra.mrb[0].mxu0 %v727
    %v1536 = vpop.f32.mrb[0].mxu0
    %v1537 = vadd.f32 %v1282, %v1536
    %v1538 = vpop.f32.mrb[0].mxu0
    %1539 = vmatprep.mubr.f32.mxu0 %v732
    %1540 = vmatmul.mubr.f32.gmra.mrb[0].mxu0 %v731
    %v1541 = vpop.f32.mrb[0].mxu0
    %v1542 = vadd.f32 %v1287, %v1541
    %v1543 = vpop.f32.mrb[0].mxu0
    %1544 = vmatprep.mubr.f32.mxu0 %v736
    %1545 = vmatmul.mubr.f32.gmra.mrb[0].mxu0 %v735
    %v1546 = vpop.f32.mrb[0].mxu0
    %v1547 = vadd.f32 %v1292, %v1546
    %v1548 = vpop.f32.mrb[0].mxu0
    %1549 = vmatprep.mubr.f32.mxu0 %v740
    %1550 = vmatmul.mubr.f32.gmra.mrb[0].mxu0 %v739
    %v1551 = vpop.f32.mrb[0].mxu0
    %v1552 = vadd.f32 %v1297, %v1551
    %v1553 = vpop.f32.mrb[0].mxu0
    %1554 = vmatprep.mubr.f32.mxu0 %v744
    %1555 = vmatmul.mubr.f32.gmra.mrb[0].mxu0 %v743
    %v1556 = vpop.f32.mrb[0].mxu0
    %v1557 = vadd.f32 %v1302, %v1556
    %v1558 = vpop.f32.mrb[0].mxu0
    %1559 = vmatprep.mubr.f32.mxu0 %v748
    %1560 = vmatmul.mubr.f32.gmra.mrb[0].mxu0 %v747
    %v1561 = vpop.f32.mrb[0].mxu0
    %v1562 = vadd.f32 %v1307, %v1561
    %v1563 = vpop.f32.mrb[0].mxu0
    %1564 = vmatprep.mubr.f32.mxu0 %v752
    %1565 = vmatmul.mubr.f32.gmra.mrb[0].mxu0 %v751
    %v1566 = vpop.f32.mrb[0].mxu0
    %v1567 = vadd.f32 %v1312, %v1566
    %v1568 = vpop.f32.mrb[0].mxu0
    %1569 = vmatprep.mubr.f32.mxu0 %v756
    %1570 = vmatmul.mubr.f32.gmra.mrb[0].mxu0 %v755
    %v1571 = vpop.f32.mrb[0].mxu0
    %v1572 = vadd.f32 %v1317, %v1571
    %v1573 = vpop.f32.mrb[0].mxu0
    %1574 = vmatprep.mubr.f32.mxu0 %v760
    %1575 = vmatmul.mubr.f32.gmra.mrb[0].mxu0 %v759
    %v1576 = vpop.f32.mrb[0].mxu0
    %v1577 = vadd.f32 %v1322, %v1576
    %v1578 = vpop.f32.mrb[0].mxu0
    %1579 = vmatprep.mubr.f32.mxu0 %v764
    %1580 = vmatmul.mubr.f32.gmra.mrb[0].mxu0 %v763
    %v1581 = vpop.f32.mrb[0].mxu0
    %v1582 = vadd.f32 %v1327, %v1581
    %v1583 = vpop.f32.mrb[0].mxu0
    %1584 = vmatprep.mubr.f32.mxu0 %v768
    %1585 = vmatmul.mubr.f32.gmra.mrb[0].mxu0 %v767
    %v1586 = vpop.f32.mrb[0].mxu0
    %v1587 = vadd.f32 %v1332, %v1586
    %v1588 = vpop.f32.mrb[0].mxu0
    %1589 = vmatprep.mubr.f32.mxu0 %v772
    %1590 = vmatmul.mubr.f32.gmra.mrb[0].mxu0 %v771
    %v1591 = vpop.f32.mrb[0].mxu0
    %v1592 = vadd.f32 %v1337, %v1591
    %v1593 = vpop.f32.mrb[0].mxu0
    %1594 = vmatprep.mubr.f32.mxu0 %v776
    %1595 = vmatmul.mubr.f32.gmra.mrb[0].mxu0 %v775
    %v1596 = vpop.f32.mrb[0].mxu0
    %v1597 = vadd.f32 %v1342, %v1596
    %v1598 = vpop.f32.mrb[0].mxu0
    %1599 = vmatprep.mubr.f32.mxu0 %v780
    %1600 = vmatmul.mubr.f32.gmra.mrb[0].mxu0 %v779
    %v1601 = vpop.f32.mrb[0].mxu0
    %v1602 = vadd.f32 %v1347, %v1601
    %v1603 = vpop.f32.mrb[0].mxu0
    %1604 = vmatprep.mubr.f32.mxu0 %v784
    %1605 = vmatmul.mubr.f32.gmra.mrb[0].mxu0 %v783
    %v1606 = vpop.f32.mrb[0].mxu0
    %v1607 = vadd.f32 %v1352, %v1606
    %v1608 = vpop.f32.mrb[0].mxu0
    %1609 = vmatprep.mubr.f32.mxu0 %v788
    %1610 = vmatmul.mubr.f32.gmra.mrb[0].mxu0 %v787
    %v1611 = vpop.f32.mrb[0].mxu0
    %v1612 = vadd.f32 %v1357, %v1611
    %v1613 = vpop.f32.mrb[0].mxu0
    %1614 = vmatprep.mubr.f32.mxu0 %v792
    %1615 = vmatmul.mubr.f32.gmra.mrb[0].mxu0 %v791
    %v1616 = vpop.f32.mrb[0].mxu0
    %v1617 = vadd.f32 %v1362, %v1616
    %v1618 = vpop.f32.mrb[0].mxu0
    %1619 = vmatprep.mubr.f32.mxu0 %v796
    %1620 = vmatmul.mubr.f32.gmra.mrb[0].mxu0 %v795
    %v1621 = vpop.f32.mrb[0].mxu0
    %v1622 = vadd.f32 %v1367, %v1621
    %v1623 = vpop.f32.mrb[0].mxu0
    %1624 = vmatprep.mubr.f32.mxu0 %v800
    %1625 = vmatmul.mubr.f32.gmra.mrb[0].mxu0 %v799
    %v1626 = vpop.f32.mrb[0].mxu0
    %v1627 = vadd.f32 %v1372, %v1626
    %v1628 = vpop.f32.mrb[0].mxu0
    %1629 = vmatprep.mubr.f32.mxu0 %v804
    %1630 = vmatmul.mubr.f32.gmra.mrb[0].mxu0 %v803
    %v1631 = vpop.f32.mrb[0].mxu0
    %v1632 = vadd.f32 %v1377, %v1631
    %v1633 = vpop.f32.mrb[0].mxu0
    %1634 = vmatprep.mubr.f32.mxu0 %v808
    %1635 = vmatmul.mubr.f32.gmra.mrb[0].mxu0 %v807
    %v1636 = vpop.f32.mrb[0].mxu0
    %v1637 = vadd.f32 %v1382, %v1636
    %v1638 = vpop.f32.mrb[0].mxu0
    %1639 = vmatprep.mubr.f32.mxu0 %v812
    %1640 = vmatmul.mubr.f32.gmra.mrb[0].mxu0 %v811
    %v1641 = vpop.f32.mrb[0].mxu0
    %v1642 = vadd.f32 %v1387, %v1641
    %v1643 = vpop.f32.mrb[0].mxu0
    %1644 = vmatprep.mubr.f32.mxu0 %v816
    %1645 = vmatmul.mubr.f32.gmra.mrb[0].mxu0 %v815
    %v1646 = vpop.f32.mrb[0].mxu0
    %v1647 = vadd.f32 %v1392, %v1646
    %v1648 = vpop.f32.mrb[0].mxu0
    %1649 = vmatprep.mubr.f32.mxu0 %v820
    %1650 = vmatmul.mubr.f32.gmra.mrb[0].mxu0 %v819
    %v1651 = vpop.f32.mrb[0].mxu0
    %v1652 = vadd.f32 %v1397, %v1651
    %v1653 = vpop.f32.mrb[0].mxu0
    %1654 = vmatprep.mubr.f32.mxu0 %v824
    %1655 = vmatmul.mubr.f32.gmra.mrb[0].mxu0 %v823
    %v1656 = vpop.f32.mrb[0].mxu0
    %v1657 = vadd.f32 %v1402, %v1656
    %v1658 = vpop.f32.mrb[0].mxu0
    %1659 = vmatprep.mubr.f32.mxu0 %v828
    %1660 = vmatmul.mubr.f32.gmra.mrb[0].mxu0 %v827
    %v1661 = vpop.f32.mrb[0].mxu0
    %v1662 = vadd.f32 %v1407, %v1661
    %v1663 = vpop.f32.mrb[0].mxu0
    %1664 = vmatprep.mubr.f32.mxu0 %v832
    %1665 = vmatmul.mubr.f32.gmra.mrb[0].mxu0 %v831
    %v1666 = vpop.f32.mrb[0].mxu0
    %v1667 = vadd.f32 %v1412, %v1666
    %v1668 = vpop.f32.mrb[0].mxu0
    %1669 = vmatprep.mubr.f32.mxu0 %v836
    %1670 = vmatmul.mubr.f32.gmra.mrb[0].mxu0 %v835
    %v1671 = vpop.f32.mrb[0].mxu0
    %v1672 = vadd.f32 %v1417, %v1671
    %v1673 = vpop.f32.mrb[0].mxu0
    %1674 = vmatprep.mubr.f32.mxu0 %v840
    %1675 = vmatmul.mubr.f32.gmra.mrb[0].mxu0 %v839
    %v1676 = vpop.f32.mrb[0].mxu0
    %v1677 = vadd.f32 %v1422, %v1676
    %v1678 = vpop.f32.mrb[0].mxu0
    %1679 = vmatprep.mubr.f32.mxu0 %v844
    %1680 = vmatmul.mubr.f32.gmra.mrb[0].mxu0 %v843
    %v1681 = vpop.f32.mrb[0].mxu0
    %v1682 = vadd.f32 %v1427, %v1681
    %v1683 = vpop.f32.mrb[0].mxu0
    %1684 = vmatprep.mubr.f32.mxu0 %v848
    %1685 = vmatmul.mubr.f32.gmra.mrb[0].mxu0 %v847
    %v1686 = vpop.f32.mrb[0].mxu0
    %v1687 = vadd.f32 %v1432, %v1686
    %v1688 = vpop.f32.mrb[0].mxu0
    %1689 = vmatprep.mubr.f32.mxu0 %v852
    %1690 = vmatmul.mubr.f32.gmra.mrb[0].mxu0 %v851
    %v1691 = vpop.f32.mrb[0].mxu0
    %v1692 = vadd.f32 %v1437, %v1691
    %v1693 = vpop.f32.mrb[0].mxu0
    %1694 = vmatprep.mubr.f32.mxu0 %v856
    %1695 = vmatmul.mubr.f32.gmra.mrb[0].mxu0 %v855
    %v1696 = vpop.f32.mrb[0].mxu0
    %v1697 = vadd.f32 %v1442, %v1696
    %v1698 = vpop.f32.mrb[0].mxu0
    %1699 = vmatprep.mubr.f32.mxu0 %v860
    %1700 = vmatmul.mubr.f32.gmra.mrb[0].mxu0 %v859
    %v1701 = vpop.f32.mrb[0].mxu0
    %v1702 = vadd.f32 %v1447, %v1701
    %v1703 = vpop.f32.mrb[0].mxu0
    %1704 = vmatprep.mubr.f32.mxu0 %v864
    %1705 = vmatmul.mubr.f32.gmra.mrb[0].mxu0 %v863
    %v1706 = vpop.f32.mrb[0].mxu0
    %v1707 = vadd.f32 %v1452, %v1706
    %v1708 = vpop.f32.mrb[0].mxu0
    %1709 = vdwg.mxu0
    %v1710 = vld [vmem:[%s6] sm:$0x1]
    %v1712 = vlaneseq
    %v1713 = vshrl.u32 %v1712, 7
    %v1714 = vsub.s32 0, %v1713
    %v1715 = vrot.slane %v1710, %v1714
    %v1717 = vadd.f32 %v1522, %v1715
    %v1718 = vadd.f32 %v1527, %v1715
    %v1719 = vadd.f32 %v1532, %v1715
    %v1720 = vadd.f32 %v1537, %v1715
    %v1721 = vadd.f32 %v1542, %v1715
    %v1722 = vadd.f32 %v1547, %v1715
    %v1723 = vadd.f32 %v1552, %v1715
    %v1724 = vadd.f32 %v1557, %v1715
    %v1725 = vadd.f32 %v1562, %v1715
    %v1726 = vadd.f32 %v1567, %v1715
    %v1727 = vadd.f32 %v1572, %v1715
    %v1728 = vadd.f32 %v1577, %v1715
    %v1729 = vadd.f32 %v1582, %v1715
    %v1730 = vadd.f32 %v1587, %v1715
    %v1731 = vadd.f32 %v1592, %v1715
    %v1732 = vadd.f32 %v1597, %v1715
    %v1733 = vadd.f32 %v1602, %v1715
    %v1734 = vadd.f32 %v1607, %v1715
    %v1735 = vadd.f32 %v1612, %v1715
    %v1736 = vadd.f32 %v1617, %v1715
    %v1737 = vadd.f32 %v1622, %v1715
    %v1738 = vadd.f32 %v1627, %v1715
    %v1739 = vadd.f32 %v1632, %v1715
    %v1740 = vadd.f32 %v1637, %v1715
    %v1741 = vadd.f32 %v1642, %v1715
    %v1742 = vadd.f32 %v1647, %v1715
    %v1743 = vadd.f32 %v1652, %v1715
    %v1744 = vadd.f32 %v1657, %v1715
    %v1745 = vadd.f32 %v1662, %v1715
    %v1746 = vadd.f32 %v1667, %v1715
    %v1747 = vadd.f32 %v1672, %v1715
    %v1748 = vadd.f32 %v1677, %v1715
    %v1749 = vadd.f32 %v1682, %v1715
    %v1750 = vadd.f32 %v1687, %v1715
    %v1751 = vadd.f32 %v1692, %v1715
    %v1752 = vadd.f32 %v1697, %v1715
    %v1753 = vadd.f32 %v1702, %v1715
    %v1754 = vadd.f32 %v1707, %v1715
    %v1755 = vxor.u32 %v1717, 2147483648
    %v1756 = vxor.u32 %v1718, 2147483648
    %v1757 = vxor.u32 %v1719, 2147483648
    %v1758 = vxor.u32 %v1720, 2147483648
    %v1759 = vxor.u32 %v1721, 2147483648
    %v1760 = vxor.u32 %v1722, 2147483648
    %v1761 = vxor.u32 %v1723, 2147483648
    %v1762 = vxor.u32 %v1724, 2147483648
    %v1763 = vxor.u32 %v1725, 2147483648
    %v1764 = vxor.u32 %v1726, 2147483648
    %v1765 = vxor.u32 %v1727, 2147483648
    %v1766 = vxor.u32 %v1728, 2147483648
    %v1767 = vxor.u32 %v1729, 2147483648
    %v1768 = vxor.u32 %v1730, 2147483648
    %v1769 = vxor.u32 %v1731, 2147483648
    %v1770 = vxor.u32 %v1732, 2147483648
    %v1771 = vxor.u32 %v1733, 2147483648
    %v1772 = vxor.u32 %v1734, 2147483648
    %v1773 = vxor.u32 %v1735, 2147483648
    %v1774 = vxor.u32 %v1736, 2147483648
    %v1775 = vxor.u32 %v1737, 2147483648
    %v1776 = vxor.u32 %v1738, 2147483648
    %v1777 = vxor.u32 %v1739, 2147483648
    %v1778 = vxor.u32 %v1740, 2147483648
    %v1779 = vxor.u32 %v1741, 2147483648
    %v1780 = vxor.u32 %v1742, 2147483648
    %v1781 = vxor.u32 %v1743, 2147483648
    %v1782 = vxor.u32 %v1744, 2147483648
    %v1783 = vxor.u32 %v1745, 2147483648
    %v1784 = vxor.u32 %v1746, 2147483648
    %v1785 = vxor.u32 %v1747, 2147483648
    %v1786 = vxor.u32 %v1748, 2147483648
    %v1787 = vxor.u32 %v1749, 2147483648
    %v1788 = vxor.u32 %v1750, 2147483648
    %v1789 = vxor.u32 %v1751, 2147483648
    %v1790 = vxor.u32 %v1752, 2147483648
    %v1791 = vxor.u32 %v1753, 2147483648
    %v1792 = vxor.u32 %v1754, 2147483648
    %v1793 = vmul.f32 %v1755, 1.442695
    %v1794 = vpow.pop %v1793
    %v1795 = vmul.f32 %v1756, 1.442695
    %v1796 = vpow.pop %v1795
    %v1797 = vmul.f32 %v1757, 1.442695
    %v1798 = vpow.pop %v1797
    %v1799 = vmul.f32 %v1758, 1.442695
    %v1800 = vpow.pop %v1799
    %v1801 = vmul.f32 %v1759, 1.442695
    %v1802 = vpow.pop %v1801
    %v1803 = vmul.f32 %v1760, 1.442695
    %v1804 = vpow.pop %v1803
    %v1805 = vmul.f32 %v1761, 1.442695
    %v1806 = vpow.pop %v1805
    %v1807 = vmul.f32 %v1762, 1.442695
    %v1808 = vpow.pop %v1807
    %v1809 = vmul.f32 %v1763, 1.442695
    %v1810 = vpow.pop %v1809
    %v1811 = vmul.f32 %v1764, 1.442695
    %v1812 = vpow.pop %v1811
    %v1813 = vmul.f32 %v1765, 1.442695
    %v1814 = vpow.pop %v1813
    %v1815 = vmul.f32 %v1766, 1.442695
    %v1816 = vpow.pop %v1815
    %v1817 = vmul.f32 %v1767, 1.442695
    %v1818 = vpow.pop %v1817
    %v1819 = vmul.f32 %v1768, 1.442695
    %v1820 = vpow.pop %v1819
    %v1821 = vmul.f32 %v1769, 1.442695
    %v1822 = vpow.pop %v1821
    %v1823 = vmul.f32 %v1770, 1.442695
    %v1824 = vpow.pop %v1823
    %v1825 = vmul.f32 %v1771, 1.442695
    %v1826 = vpow.pop %v1825
    %v1827 = vmul.f32 %v1772, 1.442695
    %v1828 = vpow.pop %v1827
    %v1829 = vmul.f32 %v1773, 1.442695
    %v1830 = vpow.pop %v1829
    %v1831 = vmul.f32 %v1774, 1.442695
    %v1832 = vpow.pop %v1831
    %v1833 = vmul.f32 %v1775, 1.442695
    %v1834 = vpow.pop %v1833
    %v1835 = vmul.f32 %v1776, 1.442695
    %v1836 = vpow.pop %v1835
    %v1837 = vmul.f32 %v1777, 1.442695
    %v1838 = vpow.pop %v1837
    %v1839 = vmul.f32 %v1778, 1.442695
    %v1840 = vpow.pop %v1839
    %v1841 = vmul.f32 %v1779, 1.442695
    %v1842 = vpow.pop %v1841
    %v1843 = vmul.f32 %v1780, 1.442695
    %v1844 = vpow.pop %v1843
    %v1845 = vmul.f32 %v1781, 1.442695
    %v1846 = vpow.pop %v1845
    %v1847 = vmul.f32 %v1782, 1.442695
    %v1848 = vpow.pop %v1847
    %v1849 = vmul.f32 %v1783, 1.442695
    %v1850 = vpow.pop %v1849
    %v1851 = vmul.f32 %v1784, 1.442695
    %v1852 = vpow.pop %v1851
    %v1853 = vmul.f32 %v1785, 1.442695
    %v1854 = vpow.pop %v1853
    %v1855 = vmul.f32 %v1786, 1.442695
    %v1856 = vpow.pop %v1855
    %v1857 = vmul.f32 %v1787, 1.442695
    %v1858 = vpow.pop %v1857
    %v1859 = vmul.f32 %v1788, 1.442695
    %v1860 = vpow.pop %v1859
    %v1861 = vmul.f32 %v1789, 1.442695
    %v1862 = vpow.pop %v1861
    %v1863 = vmul.f32 %v1790, 1.442695
    %v1864 = vpow.pop %v1863
    %v1865 = vmul.f32 %v1791, 1.442695
    %v1866 = vpow.pop %v1865
    %v1867 = vmul.f32 %v1792, 1.442695
    %v1868 = vpow.pop %v1867
    %v1869 = vadd.f32 %v1794, 1.0
    %v1870 = vadd.f32 %v1796, 1.0
    %v1871 = vadd.f32 %v1798, 1.0
    %v1872 = vadd.f32 %v1800, 1.0
    %v1873 = vadd.f32 %v1802, 1.0
    %v1874 = vadd.f32 %v1804, 1.0
    %v1875 = vadd.f32 %v1806, 1.0
    %v1876 = vadd.f32 %v1808, 1.0
    %v1877 = vadd.f32 %v1810, 1.0
    %v1878 = vadd.f32 %v1812, 1.0
    %v1879 = vadd.f32 %v1814, 1.0
    %v1880 = vadd.f32 %v1816, 1.0
    %v1881 = vadd.f32 %v1818, 1.0
    %v1882 = vadd.f32 %v1820, 1.0
    %v1883 = vadd.f32 %v1822, 1.0
    %v1884 = vadd.f32 %v1824, 1.0
    %v1885 = vadd.f32 %v1826, 1.0
    %v1886 = vadd.f32 %v1828, 1.0
    %v1887 = vadd.f32 %v1830, 1.0
    %v1888 = vadd.f32 %v1832, 1.0
    %v1889 = vadd.f32 %v1834, 1.0
    %v1890 = vadd.f32 %v1836, 1.0
    %v1891 = vadd.f32 %v1838, 1.0
    %v1892 = vadd.f32 %v1840, 1.0
    %v1893 = vadd.f32 %v1842, 1.0
    %v1894 = vadd.f32 %v1844, 1.0
    %v1895 = vadd.f32 %v1846, 1.0
    %v1896 = vadd.f32 %v1848, 1.0
    %v1897 = vadd.f32 %v1850, 1.0
    %v1898 = vadd.f32 %v1852, 1.0
    %v1899 = vadd.f32 %v1854, 1.0
    %v1900 = vadd.f32 %v1856, 1.0
    %v1901 = vadd.f32 %v1858, 1.0
    %v1902 = vadd.f32 %v1860, 1.0
    %v1903 = vadd.f32 %v1862, 1.0
    %v1904 = vadd.f32 %v1864, 1.0
    %v1905 = vadd.f32 %v1866, 1.0
    %v1906 = vadd.f32 %v1868, 1.0
    %v1907 = vrcp.pop %v1869
    %v1908 = vmul.f32 1.0, %v1907
    %v1909 = vrcp.pop %v1870
    %v1910 = vmul.f32 1.0, %v1909
    %v1911 = vrcp.pop %v1871
    %v1912 = vmul.f32 1.0, %v1911
    %v1913 = vrcp.pop %v1872
    %v1914 = vmul.f32 1.0, %v1913
    %v1915 = vrcp.pop %v1873
    %v1916 = vmul.f32 1.0, %v1915
    %v1917 = vrcp.pop %v1874
    %v1918 = vmul.f32 1.0, %v1917
    %v1919 = vrcp.pop %v1875
    %v1920 = vmul.f32 1.0, %v1919
    %v1921 = vrcp.pop %v1876
    %v1922 = vmul.f32 1.0, %v1921
    %v1923 = vrcp.pop %v1877
    %v1924 = vmul.f32 1.0, %v1923
    %v1925 = vrcp.pop %v1878
    %v1926 = vmul.f32 1.0, %v1925
    %v1927 = vrcp.pop %v1879
    %v1928 = vmul.f32 1.0, %v1927
    %v1929 = vrcp.pop %v1880
    %v1930 = vmul.f32 1.0, %v1929
    %v1931 = vrcp.pop %v1881
    %v1932 = vmul.f32 1.0, %v1931
    %v1933 = vrcp.pop %v1882
    %v1934 = vmul.f32 1.0, %v1933
    %v1935 = vrcp.pop %v1883
    %v1936 = vmul.f32 1.0, %v1935
    %v1937 = vrcp.pop %v1884
    %v1938 = vmul.f32 1.0, %v1937
    %v1939 = vrcp.pop %v1885
    %v1940 = vmul.f32 1.0, %v1939
    %v1941 = vrcp.pop %v1886
    %v1942 = vmul.f32 1.0, %v1941
    %v1943 = vrcp.pop %v1887
    %v1944 = vmul.f32 1.0, %v1943
    %v1945 = vrcp.pop %v1888
    %v1946 = vmul.f32 1.0, %v1945
    %v1947 = vrcp.pop %v1889
    %v1948 = vmul.f32 1.0, %v1947
    %v1949 = vrcp.pop %v1890
    %v1950 = vmul.f32 1.0, %v1949
    %v1951 = vrcp.pop %v1891
    %v1952 = vmul.f32 1.0, %v1951
    %v1953 = vrcp.pop %v1892
    %v1954 = vmul.f32 1.0, %v1953
    %v1955 = vrcp.pop %v1893
    %v1956 = vmul.f32 1.0, %v1955
    %v1957 = vrcp.pop %v1894
    %v1958 = vmul.f32 1.0, %v1957
    %v1959 = vrcp.pop %v1895
    %v1960 = vmul.f32 1.0, %v1959
    %v1961 = vrcp.pop %v1896
    %v1962 = vmul.f32 1.0, %v1961
    %v1963 = vrcp.pop %v1897
    %v1964 = vmul.f32 1.0, %v1963
    %v1965 = vrcp.pop %v1898
    %v1966 = vmul.f32 1.0, %v1965
    %v1967 = vrcp.pop %v1899
    %v1968 = vmul.f32 1.0, %v1967
    %v1969 = vrcp.pop %v1900
    %v1970 = vmul.f32 1.0, %v1969
    %v1971 = vrcp.pop %v1901
    %v1972 = vmul.f32 1.0, %v1971
    %v1973 = vrcp.pop %v1902
    %v1974 = vmul.f32 1.0, %v1973
    %v1975 = vrcp.pop %v1903
    %v1976 = vmul.f32 1.0, %v1975
    %v1977 = vrcp.pop %v1904
    %v1978 = vmul.f32 1.0, %v1977
    %v1979 = vrcp.pop %v1905
    %v1980 = vmul.f32 1.0, %v1979
    %v1981 = vrcp.pop %v1906
    %v1982 = vmul.f32 1.0, %v1981
    %v1983 = vmul.f32 %v1717, %v1908
    %v1984 = vmul.f32 %v1718, %v1910
    %v1985 = vmul.f32 %v1719, %v1912
    %v1986 = vmul.f32 %v1720, %v1914
    %v1987 = vmul.f32 %v1721, %v1916
    %v1988 = vmul.f32 %v1722, %v1918
    %v1989 = vmul.f32 %v1723, %v1920
    %v1990 = vmul.f32 %v1724, %v1922
    %v1991 = vmul.f32 %v1725, %v1924
    %v1992 = vmul.f32 %v1726, %v1926
    %v1993 = vmul.f32 %v1727, %v1928
    %v1994 = vmul.f32 %v1728, %v1930
    %v1995 = vmul.f32 %v1729, %v1932
    %v1996 = vmul.f32 %v1730, %v1934
    %v1997 = vmul.f32 %v1731, %v1936
    %v1998 = vmul.f32 %v1732, %v1938
    %v1999 = vmul.f32 %v1733, %v1940
    %v2000 = vmul.f32 %v1734, %v1942
    %v2001 = vmul.f32 %v1735, %v1944
    %v2002 = vmul.f32 %v1736, %v1946
    %v2003 = vmul.f32 %v1737, %v1948
    %v2004 = vmul.f32 %v1738, %v1950
    %v2005 = vmul.f32 %v1739, %v1952
    %v2006 = vmul.f32 %v1740, %v1954
    %v2007 = vmul.f32 %v1741, %v1956
    %v2008 = vmul.f32 %v1742, %v1958
    %v2009 = vmul.f32 %v1743, %v1960
    %v2010 = vmul.f32 %v1744, %v1962
    %v2011 = vmul.f32 %v1745, %v1964
    %v2012 = vmul.f32 %v1746, %v1966
    %v2013 = vmul.f32 %v1747, %v1968
    %v2014 = vmul.f32 %v1748, %v1970
    %v2015 = vmul.f32 %v1749, %v1972
    %v2016 = vmul.f32 %v1750, %v1974
    %v2017 = vmul.f32 %v1751, %v1976
    %v2018 = vmul.f32 %v1752, %v1978
    %v2019 = vmul.f32 %v1753, %v1980
    %v2020 = vmul.f32 %v1754, %v1982
    %2021 = vst [vmem:[#allocation2] sm:$0xff] %v1983
    %2022 = vst [vmem:[#allocation2 + $0x8] sm:$0xff] %v1984
    %2023 = vst [vmem:[#allocation2 + $0x10] sm:$0xff] %v1985
    %2024 = vst [vmem:[#allocation2 + $0x18] sm:$0xff] %v1986
    %2025 = vst [vmem:[#allocation2 + $0x20] sm:$0xff] %v1987
    %2026 = vst [vmem:[#allocation2 + $0x28] sm:$0xff] %v1988
    %2027 = vst [vmem:[#allocation2 + $0x30] sm:$0xff] %v1989
    %2028 = vst [vmem:[#allocation2 + $0x38] sm:$0xff] %v1990
    %2029 = vst [vmem:[#allocation2 + $0x40] sm:$0xff] %v1991
    %2030 = vst [vmem:[#allocation2 + $0x48] sm:$0xff] %v1992
    %2031 = vst [vmem:[#allocation2 + $0x50] sm:$0xff] %v1993
    %2032 = vst [vmem:[#allocation2 + $0x58] sm:$0xff] %v1994
    %2033 = vst [vmem:[#allocation2 + $0x60] sm:$0xff] %v1995
    %2034 = vst [vmem:[#allocation2 + $0x68] sm:$0xff] %v1996
    %2035 = vst [vmem:[#allocation2 + $0x70] sm:$0xff] %v1997
    %2036 = vst [vmem:[#allocation2 + $0x78] sm:$0xff] %v1998
    %2037 = vst [vmem:[#allocation2 + $0x80] sm:$0xff] %v1999
    %2038 = vst [vmem:[#allocation2 + $0x88] sm:$0xff] %v2000
    %2039 = vst [vmem:[#allocation2 + $0x90] sm:$0xff] %v2001
    %2040 = vst [vmem:[#allocation2 + $0x98] sm:$0xff] %v2002
    %2041 = vst [vmem:[#allocation2 + $0xa0] sm:$0xff] %v2003
    %2042 = vst [vmem:[#allocation2 + $0xa8] sm:$0xff] %v2004
    %2043 = vst [vmem:[#allocation2 + $0xb0] sm:$0xff] %v2005
    %2044 = vst [vmem:[#allocation2 + $0xb8] sm:$0xff] %v2006
    %2045 = vst [vmem:[#allocation2 + $0xc0] sm:$0xff] %v2007
    %2046 = vst [vmem:[#allocation2 + $0xc8] sm:$0xff] %v2008
    %2047 = vst [vmem:[#allocation2 + $0xd0] sm:$0xff] %v2009
    %2048 = vst [vmem:[#allocation2 + $0xd8] sm:$0xff] %v2010
    %2049 = vst [vmem:[#allocation2 + $0xe0] sm:$0xff] %v2011
    %2050 = vst [vmem:[#allocation2 + $0xe8] sm:$0xff] %v2012
    %2051 = vst [vmem:[#allocation2 + $0xf0] sm:$0xff] %v2013
    %2052 = vst [vmem:[#allocation2 + $0xf8] sm:$0xff] %v2014
    %2053 = vst [vmem:[#allocation2 + $0x100] sm:$0xff] %v2015
    %2054 = vst [vmem:[#allocation2 + $0x108] sm:$0xff] %v2016
    %2055 = vst [vmem:[#allocation2 + $0x110] sm:$0xff] %v2017
    %2056 = vst [vmem:[#allocation2 + $0x118] sm:$0xff] %v2018
    %2057 = vst [vmem:[#allocation2 + $0x120] sm:$0xff] %v2019
    %2058 = vst [vmem:[#allocation2 + $0x128] sm:$0xff] %v2020
    // Predicated region
    $region30: #{init_e_forward.1} parent=1 // pred_check
      _
    $region31: #{init_e_forward.1} parent=1 // pred_check_branch
      %2060 = sbr.rel (0) target = $region33
    $region32: #{init_e_forward.1} parent=1 // pred_region
      %s2062 = ssub.s32 4864, 4864
      %2063 = vsyncadd [#allocation3], %s2062
      %s2064 = sshll.u32 [#allocation2], 4
      %s2065 = int_to_ptr.vmem [resolvable:$true] %s2064
      %2070 = dma.vmem_to_hbm [thread:$0]  %s2065, 4864, %s7, [#allocation3], 128, 128, 8
    $region33: #{init_e_forward.1} parent=1 // pred_fallthru
      _
    // Predicated region
    $region34: #{init_e_forward.1} parent=1 // pred_check
      _
    $region35: #{init_e_forward.1} parent=1 // pred_check_branch
      %2072 = sbr.rel (0) target = $region37
    $region36: #{init_e_forward.1} parent=1 // pred_region
      %2073 = dma.done [#allocation3], 4864
    $region37: #{init_e_forward.1} parent=1 // pred_fallthru
      _
    %2074 = vsyncpa [#allocation3], 1

</llo_original>
